<compile_context>
chip_gen: v7x
topology: tpu7x:2x2x1
jax: 0.10.0
libtpu: 0.0.40
codegen_flags: <defaults>
</compile_context>

<pallas_src>
import functools
import math

import jax
import jax.numpy as jnp
from jax import lax
from jax.experimental import pallas as pl
from jax.experimental.pallas import tpu as pltpu


def _round_up(x, m):
    return ((x + m - 1) // m) * m


def _vmem_limit(bytes_per_step):
    # ~2x double-buffering + headroom, clamped well inside every generation's
    # scoped VMEM (v5e default 16 MiB, v7x physical 64 MiB).
    return int(min(max(4 * bytes_per_step + (1 << 20), 8 << 20), 32 << 20))


# ---------------------------------------------------------------------------
# Kernel 1: Conv2d (in-kernel tap accumulation on the MXU) + folded
#           inference-mode BatchNorm + GELU.
# x_ref is the stride-phase-split padded image  [1, S*S, Hq, Wq, Cin]; tap
# (di, dj) of the KHxKW window is the contiguous (unstrided) slice
#   x[(di%S)*S + (dj%S), di//S : di//S + Ho, dj//S : dj//S + Wo, :]
# ---------------------------------------------------------------------------
def _conv_bn_gelu_kernel(x_ref, w_ref, scale_ref, bias_ref, o_ref,
                         *, S, KH, KW, Ho, Wo):
    cin = x_ref.shape[-1]
    tn = o_ref.shape[-1]
    acc = jnp.zeros((Ho * Wo, tn), jnp.float32)
    for di in range(KH):                       # static unroll over the taps
        for dj in range(KW):
            t = di * KW + dj
            p = (di % S) * S + (dj % S)
            tap = x_ref[0, p, pl.ds(di // S, Ho), pl.ds(dj // S, Wo), :]
            lhs = tap.reshape(Ho * Wo, cin).astype(jnp.bfloat16)   # MXU dtype
            acc = acc + jnp.dot(lhs, w_ref[t],
                                preferred_element_type=jnp.float32)
    # Folded conv-bias + inference-mode BatchNorm, in f32.
    y = acc * scale_ref[...] + bias_ref[...]
    # GELU epilogue (EUP tanh).
    # TODO(synk): PyTorch nn.GELU() default is the exact erf form; erf lowering
    # in Mosaic is not guaranteed, so the tanh approximation is used (~1e-3).
    c = 0.7978845608028654                     # sqrt(2/pi), hoisted constant
    y2 = y * y
    g = 0.5 * y * (1.0 + jnp.tanh(c * (y + 0.044715 * y2 * y)))
    o_ref[0] = g.astype(o_ref.dtype)


# ---------------------------------------------------------------------------
# Kernel 2: MaxPool2d(3, stride=S, padding=P) — max-fold over the 9 window taps
# taken as contiguous slices of the phase-split (-inf padded) conv output.
# ---------------------------------------------------------------------------
def _maxpool_kernel(y_ref, o_ref, *, S, PK, Ho2, Wo2):
    acc = None
    for di in range(PK):
        for dj in range(PK):
            p = (di % S) * S + (dj % S)
            tap = y_ref[0, p, pl.ds(di // S, Ho2), pl.ds(dj // S, Wo2), :]
            acc = tap if acc is None else jnp.maximum(acc, tap)
    o_ref[0] = acc.astype(o_ref.dtype)


def conv_embed_forward(x, conv_w, conv_b, bn_gamma, bn_beta, bn_mean, bn_var,
                       *, stride, padding, eps=1e-5):
    """ConvEmbed forward.  x: [B, Cin, H, W] (NCHW).  Returns NCHW output."""
    B, Cin, H, W = x.shape
    Cout, _, KH, KW = conv_w.shape
    S, P = stride, padding

    Ho = (H + 2 * P - KH) // S + 1
    Wo = (W + 2 * P - KW) // S + 1
    Cout_p = _round_up(Cout, 128)          # lane-dense output channels
    TN = 128                               # Cout tile (MXU lane edge)

    # ---- layout prep (1x traffic; no im2col HBM amplification) ---------------
    xh = jnp.transpose(x, (0, 2, 3, 1))                        # NHWC
    Hp = _round_up(H + 2 * P, S)
    Wp = _round_up(W + 2 * P, S)
    xp = jnp.pad(xh, ((0, 0),
                      (P, Hp - H - P),
                      (P, Wp - W - P),
                      (0, 0)))                                  # conv zero pad
    Hq, Wq = Hp // S, Wp // S
    xr = (xp.reshape(B, Hq, S, Wq, S, Cin)                      # phase split
            .transpose(0, 2, 4, 1, 3, 5)
            .reshape(B, S * S, Hq, Wq, Cin))

    # ---- fold conv bias + inference BatchNorm into per-channel scale/bias ----
    # TODO(synk): training-mode batch statistics are not computed in-kernel.
    inv_std = lax.rsqrt(bn_var + eps)
    scale = jnp.zeros((Cout_p,), jnp.float32).at[:Cout].set(bn_gamma * inv_std)
    bias = jnp.zeros((Cout_p,), jnp.float32).at[:Cout].set(
        (conv_b - bn_mean) * bn_gamma * inv_std + bn_beta)
    scale = scale.reshape(1, Cout_p)
    bias = bias.reshape(1, Cout_p)
    # Per-tap weights [KH*KW, Cin, Cout_p] in bf16 (one-time parameter prep).
    wk = jnp.transpose(conv_w, (2, 3, 1, 0)).reshape(KH * KW, Cin, Cout)
    wk = jnp.pad(wk, ((0, 0), (0, 0), (0, Cout_p - Cout))).astype(jnp.bfloat16)

    conv_step_bytes = (S * S * Hq * Wq * Cin * 4 + KH * KW * Cin * TN * 2
                       + Ho * Wo * TN * 4 + 2 * TN * 4)
    cost = pl.CostEstimate(
        flops=2 * B * Ho * Wo * KH * KW * Cin * Cout_p,
        transcendentals=B * Ho * Wo * Cout_p,
        bytes_accessed=int(xr.size * 4 + wk.size * 2 + B * Ho * Wo * Cout_p * 4))

    y = pl.pallas_call(
        functools.partial(_conv_bn_gelu_kernel,
                          S=S, KH=KH, KW=KW, Ho=Ho, Wo=Wo),
        out_shape=jax.ShapeDtypeStruct((B, Ho * Wo, Cout_p), jnp.float32),
        grid_spec=pltpu.PrefetchScalarGridSpec(
            num_scalar_prefetch=0,
            grid=(B, Cout_p // TN),
            in_specs=[
                # whole (tiny) phase-split image per batch; resident across j
                pl.BlockSpec((1, S * S, Hq, Wq, Cin),
                             lambda b, j: (b, 0, 0, 0, 0)),
                pl.BlockSpec((KH * KW, Cin, TN), lambda b, j: (0, 0, j)),
                pl.BlockSpec((1, TN), lambda b, j: (0, j)),
                pl.BlockSpec((1, TN), lambda b, j: (0, j)),
            ],
            out_specs=pl.BlockSpec((1, Ho * Wo, TN), lambda b, j: (b, 0, j)),
        ),
        compiler_params=pltpu.CompilerParams(
            dimension_semantics=("parallel", "parallel"),
            vmem_limit_bytes=_vmem_limit(conv_step_bytes)),
        cost_estimate=cost,
    )(xr, wk, scale, bias)

    y = y.reshape(B, Ho, Wo, Cout_p)                           # free view

    # ---- MaxPool2d(kernel=3, stride=S, padding=P): same phase-split trick ----
    PK = 3
    Ho2 = (Ho + 2 * P - PK) // S + 1
    Wo2 = (Wo + 2 * P - PK) // S + 1
    Hp2 = _round_up(Ho + 2 * P, S)
    Wp2 = _round_up(Wo + 2 * P, S)
    yp = jnp.pad(y, ((0, 0),
                     (P, Hp2 - Ho - P),
                     (P, Wp2 - Wo - P),
                     (0, 0)), constant_values=-jnp.inf)        # PyTorch -inf pad
    Hq2, Wq2 = Hp2 // S, Wp2 // S
    yr = (yp.reshape(B, Hq2, S, Wq2, S, Cout_p)
            .transpose(0, 2, 4, 1, 3, 5)
            .reshape(B, S * S, Hq2, Wq2, Cout_p))

    pool_step_bytes = (S * S * Hq2 * Wq2 * Cout_p + Ho2 * Wo2 * Cout_p) * 4
    pooled = pl.pallas_call(
        functools.partial(_maxpool_kernel, S=S, PK=PK, Ho2=Ho2, Wo2=Wo2),
        out_shape=jax.ShapeDtypeStruct((B, Ho2, Wo2, Cout_p), jnp.float32),
        grid_spec=pltpu.PrefetchScalarGridSpec(
            num_scalar_prefetch=0,
            grid=(B,),
            in_specs=[pl.BlockSpec((1, S * S, Hq2, Wq2, Cout_p),
                                   lambda b: (b, 0, 0, 0, 0))],
            out_specs=pl.BlockSpec((1, Ho2, Wo2, Cout_p),
                                   lambda b: (b, 0, 0, 0)),
        ),
        compiler_params=pltpu.CompilerParams(
            dimension_semantics=("parallel",),
            vmem_limit_bytes=_vmem_limit(pool_step_bytes)),
    )(yr)
    # TODO(synk): at production image sizes also split both grids over
    # output-row blocks (overlapping input windows need Element-offset specs or
    # manual DMA) so v7x's two TensorCores shard within an image.

    # PyTorch layout [B, embed_dim, Ho2, Wo2]; drop the channel padding.
    return jnp.transpose(pooled[:, :, :, :Cout], (0, 3, 1, 2))


if __name__ == "__main__":
    # Small config consistent with the module:
    #   image 16x16, in_chans=4, embed_dim=32, kernel=3, stride=2, padding=1, batch=2
    B, Cin, Himg, Wimg = 2, 4, 16, 16
    embed_dim, ksize, stride, padding = 32, 3, 2, 1

    key = jax.random.PRNGKey(0)
    kx, kw, kb, kg, kbe, km, kv = jax.random.split(key, 7)

    x = jax.random.normal(kx, (B, Cin, Himg, Wimg), dtype=jnp.float32)

    fan_in = Cin * ksize * ksize
    bound = 1.0 / math.sqrt(fan_in)
    conv_w = jax.random.uniform(kw, (embed_dim, Cin, ksize, ksize),
                                jnp.float32, -bound, bound)
    conv_b = jax.random.uniform(kb, (embed_dim,), jnp.float32, -bound, bound)
    bn_gamma = jax.random.uniform(kg, (embed_dim,), jnp.float32, 0.5, 1.5)
    bn_beta = jax.random.uniform(kbe, (embed_dim,), jnp.float32, -0.5, 0.5)
    bn_mean = jax.random.uniform(km, (embed_dim,), jnp.float32, -0.5, 0.5)
    bn_var = jax.random.uniform(kv, (embed_dim,), jnp.float32, 0.5, 1.5)

    out = conv_embed_forward(x, conv_w, conv_b, bn_gamma, bn_beta, bn_mean,
                             bn_var, stride=stride, padding=padding)
    out = jax.block_until_ready(out)

    # ---- reference with plain XLA ops (same inference-mode BN + tanh GELU) ----
    conv = lax.conv_general_dilated(
        x, conv_w, window_strides=(stride, stride),
        padding=((padding, padding), (padding, padding)),
        dimension_numbers=("NCHW", "OIHW", "NCHW"))
    conv = conv + conv_b.reshape(1, embed_dim, 1, 1)
    bn = ((conv - bn_mean.reshape(1, -1, 1, 1))
          * lax.rsqrt(bn_var.reshape(1, -1, 1, 1) + 1e-5)
          * bn_gamma.reshape(1, -1, 1, 1) + bn_beta.reshape(1, -1, 1, 1))
    act = jax.nn.gelu(bn, approximate=True)
    ref = lax.reduce_window(
        act, -jnp.inf, lax.max,
        window_dimensions=(1, 1, 3, 3),
        window_strides=(1, 1, stride, stride),
        padding=((0, 0), (0, 0), (padding, padding), (padding, padding)))

    assert out.shape == ref.shape == (B, embed_dim, 4, 4), (out.shape, ref.shape)
    max_err = float(jnp.max(jnp.abs(out - ref)))
    # bf16 MXU operands vs. f32 reference -> a few 1e-3 of absolute error.
    assert max_err < 5e-2, max_err
    print("KERNEL_OK")
</pallas_src>

<mosaic_0001>
module attributes {stable_mosaic.version = 11 : i64} {
  func.func @_conv_bn_gelu_kernel(%arg0: i32, %arg1: i32, %arg2: memref<1x4x9x9x4xf32, #tpu.memory_space<vmem>>, %arg3: memref<9x4x128xbf16, #tpu.memory_space<vmem>>, %arg4: memref<1x128xf32, #tpu.memory_space<vmem>>, %arg5: memref<1x128xf32, #tpu.memory_space<vmem>>, %arg6: memref<1x64x128xf32, #tpu.memory_space<vmem>>) attributes {dimension_semantics = [#tpu.dimension_semantics<parallel>, #tpu.dimension_semantics<parallel>], iteration_bounds = array<i64: 2, 1>, scalar_prefetch = 0 : i64, scratch_operands = 0 : i64, tpu.core_type = #tpu.core_type<tc>, window_params = [{transform_indices = @transform_0, window_bounds = array<i64: 1, 4, 9, 9, 4>}, {transform_indices = @transform_1, window_bounds = array<i64: 9, 4, 128>}, {transform_indices = @transform_2, window_bounds = array<i64: 1, 128>}, {transform_indices = @transform_3, window_bounds = array<i64: 1, 128>}, {transform_indices = @transform_4, window_bounds = array<i64: 1, 64, 128>}]} {
    %cst = arith.constant 0.000000e+00 : f32
    %0 = vector.broadcast %cst : f32 to vector<64x128xf32>
    %c0 = arith.constant 0 : index
    %c0_0 = arith.constant 0 : index
    %c0_1 = arith.constant 0 : index
    %c0_2 = arith.constant 0 : index
    %c0_3 = arith.constant 0 : index
    %1 = vector.load %arg2[%c0, %c0_0, %c0_1, %c0_2, %c0_3] : memref<1x4x9x9x4xf32, #tpu.memory_space<vmem>>, vector<1x1x8x8x4xf32>
    %2 = vector.shape_cast %1 : vector<1x1x8x8x4xf32> to vector<8x8x4xf32>
    %3 = vector.shape_cast %2 : vector<8x8x4xf32> to vector<64x4xf32>
    %4 = arith.truncf %3 : vector<64x4xf32> to vector<64x4xbf16>
    %c0_4 = arith.constant 0 : index
    %c0_5 = arith.constant 0 : index
    %c0_6 = arith.constant 0 : index
    %5 = vector.load %arg3[%c0_4, %c0_5, %c0_6] : memref<9x4x128xbf16, #tpu.memory_space<vmem>>, vector<1x4x128xbf16>
    %6 = vector.shape_cast %5 : vector<1x4x128xbf16> to vector<4x128xbf16>
    %cst_7 = arith.constant dense<0.000000e+00> : vector<64x128xf32>
    %7 = tpu.matmul %4, %6, %cst_7 {dimension_numbers = #tpu.dot_dimension_numbers<[1], [0], [0], [1], [0, 0, 1, 1], [], []>} : vector<64x4xbf16>, vector<4x128xbf16>, vector<64x128xf32> -> vector<64x128xf32>
    %8 = arith.addf %0, %7 : vector<64x128xf32>
    %c0_8 = arith.constant 0 : index
    %c1 = arith.constant 1 : index
    %c0_9 = arith.constant 0 : index
    %c0_10 = arith.constant 0 : index
    %c0_11 = arith.constant 0 : index
    %9 = vector.load %arg2[%c0_8, %c1, %c0_9, %c0_10, %c0_11] : memref<1x4x9x9x4xf32, #tpu.memory_space<vmem>>, vector<1x1x8x8x4xf32>
    %10 = vector.shape_cast %9 : vector<1x1x8x8x4xf32> to vector<8x8x4xf32>
    %11 = vector.shape_cast %10 : vector<8x8x4xf32> to vector<64x4xf32>
    %12 = arith.truncf %11 : vector<64x4xf32> to vector<64x4xbf16>
    %c1_12 = arith.constant 1 : index
    %c0_13 = arith.constant 0 : index
    %c0_14 = arith.constant 0 : index
    %13 = vector.load %arg3[%c1_12, %c0_13, %c0_14] : memref<9x4x128xbf16, #tpu.memory_space<vmem>>, vector<1x4x128xbf16>
    %14 = vector.shape_cast %13 : vector<1x4x128xbf16> to vector<4x128xbf16>
    %cst_15 = arith.constant dense<0.000000e+00> : vector<64x128xf32>
    %15 = tpu.matmul %12, %14, %cst_15 {dimension_numbers = #tpu.dot_dimension_numbers<[1], [0], [0], [1], [0, 0, 1, 1], [], []>} : vector<64x4xbf16>, vector<4x128xbf16>, vector<64x128xf32> -> vector<64x128xf32>
    %16 = arith.addf %8, %15 : vector<64x128xf32>
    %c0_16 = arith.constant 0 : index
    %c0_17 = arith.constant 0 : index
    %c0_18 = arith.constant 0 : index
    %c1_19 = arith.constant 1 : index
    %c0_20 = arith.constant 0 : index
    %17 = vector.load %arg2[%c0_16, %c0_17, %c0_18, %c1_19, %c0_20] : memref<1x4x9x9x4xf32, #tpu.memory_space<vmem>>, vector<1x1x8x8x4xf32>
    %18 = vector.shape_cast %17 : vector<1x1x8x8x4xf32> to vector<8x8x4xf32>
    %19 = vector.shape_cast %18 : vector<8x8x4xf32> to vector<64x4xf32>
    %20 = arith.truncf %19 : vector<64x4xf32> to vector<64x4xbf16>
    %c2 = arith.constant 2 : index
    %c0_21 = arith.constant 0 : index
    %c0_22 = arith.constant 0 : index
    %21 = vector.load %arg3[%c2, %c0_21, %c0_22] : memref<9x4x128xbf16, #tpu.memory_space<vmem>>, vector<1x4x128xbf16>
    %22 = vector.shape_cast %21 : vector<1x4x128xbf16> to vector<4x128xbf16>
    %cst_23 = arith.constant dense<0.000000e+00> : vector<64x128xf32>
    %23 = tpu.matmul %20, %22, %cst_23 {dimension_numbers = #tpu.dot_dimension_numbers<[1], [0], [0], [1], [0, 0, 1, 1], [], []>} : vector<64x4xbf16>, vector<4x128xbf16>, vector<64x128xf32> -> vector<64x128xf32>
    %24 = arith.addf %16, %23 : vector<64x128xf32>
    %c0_24 = arith.constant 0 : index
    %c2_25 = arith.constant 2 : index
    %c0_26 = arith.constant 0 : index
    %c0_27 = arith.constant 0 : index
    %c0_28 = arith.constant 0 : index
    %25 = vector.load %arg2[%c0_24, %c2_25, %c0_26, %c0_27, %c0_28] : memref<1x4x9x9x4xf32, #tpu.memory_space<vmem>>, vector<1x1x8x8x4xf32>
    %26 = vector.shape_cast %25 : vector<1x1x8x8x4xf32> to vector<8x8x4xf32>
    %27 = vector.shape_cast %26 : vector<8x8x4xf32> to vector<64x4xf32>
    %28 = arith.truncf %27 : vector<64x4xf32> to vector<64x4xbf16>
    %c3 = arith.constant 3 : index
    %c0_29 = arith.constant 0 : index
    %c0_30 = arith.constant 0 : index
    %29 = vector.load %arg3[%c3, %c0_29, %c0_30] : memref<9x4x128xbf16, #tpu.memory_space<vmem>>, vector<1x4x128xbf16>
    %30 = vector.shape_cast %29 : vector<1x4x128xbf16> to vector<4x128xbf16>
    %cst_31 = arith.constant dense<0.000000e+00> : vector<64x128xf32>
    %31 = tpu.matmul %28, %30, %cst_31 {dimension_numbers = #tpu.dot_dimension_numbers<[1], [0], [0], [1], [0, 0, 1, 1], [], []>} : vector<64x4xbf16>, vector<4x128xbf16>, vector<64x128xf32> -> vector<64x128xf32>
    %32 = arith.addf %24, %31 : vector<64x128xf32>
    %c0_32 = arith.constant 0 : index
    %c3_33 = arith.constant 3 : index
    %c0_34 = arith.constant 0 : index
    %c0_35 = arith.constant 0 : index
    %c0_36 = arith.constant 0 : index
    %33 = vector.load %arg2[%c0_32, %c3_33, %c0_34, %c0_35, %c0_36] : memref<1x4x9x9x4xf32, #tpu.memory_space<vmem>>, vector<1x1x8x8x4xf32>
    %34 = vector.shape_cast %33 : vector<1x1x8x8x4xf32> to vector<8x8x4xf32>
    %35 = vector.shape_cast %34 : vector<8x8x4xf32> to vector<64x4xf32>
    %36 = arith.truncf %35 : vector<64x4xf32> to vector<64x4xbf16>
    %c4 = arith.constant 4 : index
    %c0_37 = arith.constant 0 : index
    %c0_38 = arith.constant 0 : index
    %37 = vector.load %arg3[%c4, %c0_37, %c0_38] : memref<9x4x128xbf16, #tpu.memory_space<vmem>>, vector<1x4x128xbf16>
    %38 = vector.shape_cast %37 : vector<1x4x128xbf16> to vector<4x128xbf16>
    %cst_39 = arith.constant dense<0.000000e+00> : vector<64x128xf32>
    %39 = tpu.matmul %36, %38, %cst_39 {dimension_numbers = #tpu.dot_dimension_numbers<[1], [0], [0], [1], [0, 0, 1, 1], [], []>} : vector<64x4xbf16>, vector<4x128xbf16>, vector<64x128xf32> -> vector<64x128xf32>
    %40 = arith.addf %32, %39 : vector<64x128xf32>
    %c0_40 = arith.constant 0 : index
    %c2_41 = arith.constant 2 : index
    %c0_42 = arith.constant 0 : index
    %c1_43 = arith.constant 1 : index
    %c0_44 = arith.constant 0 : index
    %41 = vector.load %arg2[%c0_40, %c2_41, %c0_42, %c1_43, %c0_44] : memref<1x4x9x9x4xf32, #tpu.memory_space<vmem>>, vector<1x1x8x8x4xf32>
    %42 = vector.shape_cast %41 : vector<1x1x8x8x4xf32> to vector<8x8x4xf32>
    %43 = vector.shape_cast %42 : vector<8x8x4xf32> to vector<64x4xf32>
    %44 = arith.truncf %43 : vector<64x4xf32> to vector<64x4xbf16>
    %c5 = arith.constant 5 : index
    %c0_45 = arith.constant 0 : index
    %c0_46 = arith.constant 0 : index
    %45 = vector.load %arg3[%c5, %c0_45, %c0_46] : memref<9x4x128xbf16, #tpu.memory_space<vmem>>, vector<1x4x128xbf16>
    %46 = vector.shape_cast %45 : vector<1x4x128xbf16> to vector<4x128xbf16>
    %cst_47 = arith.constant dense<0.000000e+00> : vector<64x128xf32>
    %47 = tpu.matmul %44, %46, %cst_47 {dimension_numbers = #tpu.dot_dimension_numbers<[1], [0], [0], [1], [0, 0, 1, 1], [], []>} : vector<64x4xbf16>, vector<4x128xbf16>, vector<64x128xf32> -> vector<64x128xf32>
    %48 = arith.addf %40, %47 : vector<64x128xf32>
    %c0_48 = arith.constant 0 : index
    %c0_49 = arith.constant 0 : index
    %c1_50 = arith.constant 1 : index
    %c0_51 = arith.constant 0 : index
    %c0_52 = arith.constant 0 : index
    %49 = vector.load %arg2[%c0_48, %c0_49, %c1_50, %c0_51, %c0_52] : memref<1x4x9x9x4xf32, #tpu.memory_space<vmem>>, vector<1x1x8x8x4xf32>
    %50 = vector.shape_cast %49 : vector<1x1x8x8x4xf32> to vector<8x8x4xf32>
    %51 = vector.shape_cast %50 : vector<8x8x4xf32> to vector<64x4xf32>
    %52 = arith.truncf %51 : vector<64x4xf32> to vector<64x4xbf16>
    %c6 = arith.constant 6 : index
    %c0_53 = arith.constant 0 : index
    %c0_54 = arith.constant 0 : index
    %53 = vector.load %arg3[%c6, %c0_53, %c0_54] : memref<9x4x128xbf16, #tpu.memory_space<vmem>>, vector<1x4x128xbf16>
    %54 = vector.shape_cast %53 : vector<1x4x128xbf16> to vector<4x128xbf16>
    %cst_55 = arith.constant dense<0.000000e+00> : vector<64x128xf32>
    %55 = tpu.matmul %52, %54, %cst_55 {dimension_numbers = #tpu.dot_dimension_numbers<[1], [0], [0], [1], [0, 0, 1, 1], [], []>} : vector<64x4xbf16>, vector<4x128xbf16>, vector<64x128xf32> -> vector<64x128xf32>
    %56 = arith.addf %48, %55 : vector<64x128xf32>
    %c0_56 = arith.constant 0 : index
    %c1_57 = arith.constant 1 : index
    %c1_58 = arith.constant 1 : index
    %c0_59 = arith.constant 0 : index
    %c0_60 = arith.constant 0 : index
    %57 = vector.load %arg2[%c0_56, %c1_57, %c1_58, %c0_59, %c0_60] : memref<1x4x9x9x4xf32, #tpu.memory_space<vmem>>, vector<1x1x8x8x4xf32>
    %58 = vector.shape_cast %57 : vector<1x1x8x8x4xf32> to vector<8x8x4xf32>
    %59 = vector.shape_cast %58 : vector<8x8x4xf32> to vector<64x4xf32>
    %60 = arith.truncf %59 : vector<64x4xf32> to vector<64x4xbf16>
    %c7 = arith.constant 7 : index
    %c0_61 = arith.constant 0 : index
    %c0_62 = arith.constant 0 : index
    %61 = vector.load %arg3[%c7, %c0_61, %c0_62] : memref<9x4x128xbf16, #tpu.memory_space<vmem>>, vector<1x4x128xbf16>
    %62 = vector.shape_cast %61 : vector<1x4x128xbf16> to vector<4x128xbf16>
    %cst_63 = arith.constant dense<0.000000e+00> : vector<64x128xf32>
    %63 = tpu.matmul %60, %62, %cst_63 {dimension_numbers = #tpu.dot_dimension_numbers<[1], [0], [0], [1], [0, 0, 1, 1], [], []>} : vector<64x4xbf16>, vector<4x128xbf16>, vector<64x128xf32> -> vector<64x128xf32>
    %64 = arith.addf %56, %63 : vector<64x128xf32>
    %c0_64 = arith.constant 0 : index
    %c0_65 = arith.constant 0 : index
    %c1_66 = arith.constant 1 : index
    %c1_67 = arith.constant 1 : index
    %c0_68 = arith.constant 0 : index
    %65 = vector.load %arg2[%c0_64, %c0_65, %c1_66, %c1_67, %c0_68] : memref<1x4x9x9x4xf32, #tpu.memory_space<vmem>>, vector<1x1x8x8x4xf32>
    %66 = vector.shape_cast %65 : vector<1x1x8x8x4xf32> to vector<8x8x4xf32>
    %67 = vector.shape_cast %66 : vector<8x8x4xf32> to vector<64x4xf32>
    %68 = arith.truncf %67 : vector<64x4xf32> to vector<64x4xbf16>
    %c8 = arith.constant 8 : index
    %c0_69 = arith.constant 0 : index
    %c0_70 = arith.constant 0 : index
    %69 = vector.load %arg3[%c8, %c0_69, %c0_70] : memref<9x4x128xbf16, #tpu.memory_space<vmem>>, vector<1x4x128xbf16>
    %70 = vector.shape_cast %69 : vector<1x4x128xbf16> to vector<4x128xbf16>
    %cst_71 = arith.constant dense<0.000000e+00> : vector<64x128xf32>
    %71 = tpu.matmul %68, %70, %cst_71 {dimension_numbers = #tpu.dot_dimension_numbers<[1], [0], [0], [1], [0, 0, 1, 1], [], []>} : vector<64x4xbf16>, vector<4x128xbf16>, vector<64x128xf32> -> vector<64x128xf32>
    %72 = arith.addf %64, %71 : vector<64x128xf32>
    %c0_72 = arith.constant 0 : index
    %c0_73 = arith.constant 0 : index
    %73 = vector.load %arg4[%c0_72, %c0_73] : memref<1x128xf32, #tpu.memory_space<vmem>>, vector<1x128xf32>
    %74 = vector.broadcast %73 : vector<1x128xf32> to vector<64x128xf32>
    %75 = arith.mulf %72, %74 : vector<64x128xf32>
    %c0_74 = arith.constant 0 : index
    %c0_75 = arith.constant 0 : index
    %76 = vector.load %arg5[%c0_74, %c0_75] : memref<1x128xf32, #tpu.memory_space<vmem>>, vector<1x128xf32>
    %77 = vector.broadcast %76 : vector<1x128xf32> to vector<64x128xf32>
    %78 = arith.addf %75, %77 : vector<64x128xf32>
    %79 = arith.mulf %78, %78 : vector<64x128xf32>
    %cst_76 = arith.constant 5.000000e-01 : f32
    %80 = vector.broadcast %cst_76 : f32 to vector<64x128xf32>
    %81 = arith.mulf %80, %78 : vector<64x128xf32>
    %cst_77 = arith.constant 4.471500e-02 : f32
    %82 = vector.broadcast %cst_77 : f32 to vector<64x128xf32>
    %83 = arith.mulf %82, %79 : vector<64x128xf32>
    %84 = arith.mulf %83, %78 : vector<64x128xf32>
    %85 = arith.addf %78, %84 : vector<64x128xf32>
    %cst_78 = arith.constant 0.797884583 : f32
    %86 = vector.broadcast %cst_78 : f32 to vector<64x128xf32>
    %87 = arith.mulf %86, %85 : vector<64x128xf32>
    %88 = math.tanh %87 : vector<64x128xf32>
    %cst_79 = arith.constant 1.000000e+00 : f32
    %89 = vector.broadcast %cst_79 : f32 to vector<64x128xf32>
    %90 = arith.addf %89, %88 : vector<64x128xf32>
    %91 = arith.mulf %81, %90 : vector<64x128xf32>
    %c0_80 = arith.constant 0 : index
    %c0_81 = arith.constant 0 : index
    %c0_82 = arith.constant 0 : index
    %92 = vector.load %arg6[%c0_80, %c0_81, %c0_82] : memref<1x64x128xf32, #tpu.memory_space<vmem>>, vector<1x64x128xf32>
    %93 = vector.shape_cast %92 : vector<1x64x128xf32> to vector<64x128xf32>
    %94 = vector.shape_cast %91 : vector<64x128xf32> to vector<1x64x128xf32>
    tpu.vector_store %arg6[%c0_80, %c0_81, %c0_82], %94 {strides = array<i32>} : memref<1x64x128xf32, #tpu.memory_space<vmem>>, vector<1x64x128xf32>,
    return
  }
  func.func @transform_0(%arg0: i32, %arg1: i32) -> (i32, i32, i32, i32, i32) {
    %c0_i32 = arith.constant 0 : i32
    %c0_i32_0 = arith.constant 0 : i32
    %c0_i32_1 = arith.constant 0 : i32
    %c0_i32_2 = arith.constant 0 : i32
    %c0_i32_3 = arith.constant 0 : i32
    return %arg0, %c0_i32, %c0_i32_0, %c0_i32_1, %c0_i32_2 : i32, i32, i32, i32, i32
  }
  func.func @transform_1(%arg0: i32, %arg1: i32) -> (i32, i32, i32) {
    %c0_i32 = arith.constant 0 : i32
    %c0_i32_0 = arith.constant 0 : i32
    %c0_i32_1 = arith.constant 0 : i32
    return %c0_i32, %c0_i32_0, %arg1 : i32, i32, i32
  }
  func.func @transform_2(%arg0: i32, %arg1: i32) -> (i32, i32) {
    %c0_i32 = arith.constant 0 : i32
    %c0_i32_0 = arith.constant 0 : i32
    return %c0_i32, %arg1 : i32, i32
  }
  func.func @transform_3(%arg0: i32, %arg1: i32) -> (i32, i32) {
    %c0_i32 = arith.constant 0 : i32
    %c0_i32_0 = arith.constant 0 : i32
    return %c0_i32, %arg1 : i32, i32
  }
  func.func @transform_4(%arg0: i32, %arg1: i32) -> (i32, i32, i32) {
    %c0_i32 = arith.constant 0 : i32
    %c0_i32_0 = arith.constant 0 : i32
    return %arg0, %c0_i32, %arg1 : i32, i32, i32
  }
}

</mosaic_0001>

<llo_original>
// kernel: tpu_custom_call.1
$region0: #{tpu_custom_call.1}
  #allocation0 [shape = 'u32[]', space=smem, size = 0x4, offset = 0x4, fixed_abs, tag = 'smem constant byte address 0x4 - core index']
  #allocation1 [shape = 'u32[144,128]{1,0:T(1,128)}', space=vmem, size = 0x12000, scoped, tag = 'internal scratch']
  %s0 = inlined_call_operand.vmem [shape: f32[2,4,9,9,4], index: 0, kind: input, shape index: {}]
  %s1 = inlined_call_operand.vmem [shape: bf16[9,4,128], index: 1, kind: input, shape index: {}]
  %s2 = inlined_call_operand.vmem [shape: f32[1,128], index: 2, kind: input, shape index: {}]
  %s3 = inlined_call_operand.vmem [shape: f32[1,128], index: 3, kind: input, shape index: {}]
  %s4 = inlined_call_operand.hbm [shape: f32[2,64,128], index: 4, kind: output, shape index: {}]
  %s5 = sld [smem:[#allocation0]]
  $region49: #{tpu_custom_call.1} parent=0
    _
  %s7 = ssub.s32 1, %s5
  %s8 = scalar_select 0, %s7, %s5
  $region1: #{tpu_custom_call.1} parent=0
    #allocation2 [shape = 'u8[65536]{0}', space=vmem, size = 0x10000, scoped, tag = 'output window, operand 0']
    #allocation3 [shape = 's32[2]{0}', space=sflag, size = 0x8, scoped, tag = 'scoped memory for tpu_custom_call.1']
    %9 = vsyncpa [#allocation3], 0
    %s10 = scalar_lea.sflag [#allocation3], 1
    %11 = vsyncpa %s10, 0
    loop: start=0, step=1, limit=4
    $region2: #{tpu_custom_call.1} parent=1 // loop_pre_header
      _
    $region3: #{tpu_custom_call.1} parent=1 // loop_header
      %s13 = sphi 0, %s17
      %p14 = scmp.ge.s32.totalorder %s13, 4
      %s20 = sphi 0, %s32
      %s21 = sphi 0, %s28
      %s22 = sphi 0, %s20
      %s23 = sphi 0, %s21
      %s24 = sphi 0, %s22
      %s25 = sphi 0, %s23
      %s35 = sphi 0, %s37
      %s38 = sphi 0, %s35
      %s39 = sphi 0, %s38
      %s55 = sphi 0, %s39
      %s61 = sphi 0, %s63
      %s64 = sphi 0, %s61
      %s65 = sphi 0, %s64
      %s81 = sphi 0, %s65
      %s87 = sphi 0, %s89
      %s90 = sphi 0, %s87
      %s91 = sphi 0, %s90
      %s107 = sphi 0, %s91
      %s113 = sphi 0, %s115
      %s116 = sphi 0, %s113
      %s117 = sphi 0, %s116
      %s133 = sphi 0, %s117
      %s141 = sphi 0, %s143
      %s144 = sphi 0, %s141
      %s145 = sphi 0, %s144
      %s161 = sphi 0, %s145
    $region4: #{tpu_custom_call.1} parent=1 // loop_header_branch
      %16 = sbr.rel (%p14) target = $region8
    $region5: #{tpu_custom_call.1} parent=1 // loop_body
      %s18 = ssub.s32 %s13, 1
      %s19 = ssub.s32 %s13, 2
      %s26 = sadd.s32 1, %s21
      %p27 = scmp.ge.s32.totalorder %s26, 1
      %s28 = scalar_select %p27, 0, %s26
      %s29 = sadd.s32 1, %s20
      %s30 = scalar_select %p27, %s29, %s20
      %p31 = scmp.ge.s32.totalorder %s30, 2
      %s32 = scalar_select %p31, 0, %s30
      %s33 = ssub.s32 %s20, %s32
      %p34 = scmp.eq.s32.totalorder %s33, 0
      %s36 = sadd.s32 %s35, 1
      %s37 = scalar_select %p34, %s35, %s36
      %p40 = pneg %p34
      %p41 = scmp.eq.s32.totalorder %s13, 1
      %p42 = por %p40, %p41
      %p43 = scmp.ne.s32.totalorder %s35, %s38
      %p44 = scmp.eq.s32.totalorder %s13, 0
      %p45 = por %p43, %p44
      %p46 = scmp.ne.s32.totalorder %s35, %s38
      %p47 = scmp.eq.s32.totalorder %s18, 1
      %p48 = por %p46, %p47
      %p49 = scmp.ne.s32.totalorder %s38, %s39
      %p50 = scmp.eq.s32.totalorder %s18, 0
      %p51 = por %p49, %p50
      %p52 = scmp.ne.s32.totalorder %s38, %s39
      %p53 = scmp.eq.s32.totalorder %s19, 1
      %p54 = por %p52, %p53
      %p56 = scmp.ne.s32.totalorder %s39, %s55
      %p57 = scmp.eq.s32.totalorder %s19, 0
      %p58 = por %p56, %p57
      %s59 = ssub.s32 %s21, %s28
      %p60 = scmp.eq.s32.totalorder %s59, 0
      %s62 = sadd.s32 %s61, 1
      %s63 = scalar_select %p60, %s61, %s62
      %p66 = pneg %p60
      %p67 = scmp.eq.s32.totalorder %s13, 1
      %p68 = por %p66, %p67
      %p69 = scmp.ne.s32.totalorder %s61, %s64
      %p70 = scmp.eq.s32.totalorder %s13, 0
      %p71 = por %p69, %p70
      %p72 = scmp.ne.s32.totalorder %s61, %s64
      %p73 = scmp.eq.s32.totalorder %s18, 1
      %p74 = por %p72, %p73
      %p75 = scmp.ne.s32.totalorder %s64, %s65
      %p76 = scmp.eq.s32.totalorder %s18, 0
      %p77 = por %p75, %p76
      %p78 = scmp.ne.s32.totalorder %s64, %s65
      %p79 = scmp.eq.s32.totalorder %s19, 1
      %p80 = por %p78, %p79
      %p82 = scmp.ne.s32.totalorder %s65, %s81
      %p83 = scmp.eq.s32.totalorder %s19, 0
      %p84 = por %p82, %p83
      %s85 = ssub.s32 %s21, %s28
      %p86 = scmp.eq.s32.totalorder %s85, 0
      %s88 = sadd.s32 %s87, 1
      %s89 = scalar_select %p86, %s87, %s88
      %p92 = pneg %p86
      %p93 = scmp.eq.s32.totalorder %s13, 1
      %p94 = por %p92, %p93
      %p95 = scmp.ne.s32.totalorder %s87, %s90
      %p96 = scmp.eq.s32.totalorder %s13, 0
      %p97 = por %p95, %p96
      %p98 = scmp.ne.s32.totalorder %s87, %s90
      %p99 = scmp.eq.s32.totalorder %s18, 1
      %p100 = por %p98, %p99
      %p101 = scmp.ne.s32.totalorder %s90, %s91
      %p102 = scmp.eq.s32.totalorder %s18, 0
      %p103 = por %p101, %p102
      %p104 = scmp.ne.s32.totalorder %s90, %s91
      %p105 = scmp.eq.s32.totalorder %s19, 1
      %p106 = por %p104, %p105
      %p108 = scmp.ne.s32.totalorder %s91, %s107
      %p109 = scmp.eq.s32.totalorder %s19, 0
      %p110 = por %p108, %p109
      %s111 = ssub.s32 %s21, %s28
      %p112 = scmp.eq.s32.totalorder %s111, 0
      %s114 = sadd.s32 %s113, 1
      %s115 = scalar_select %p112, %s113, %s114
      %p118 = pneg %p112
      %p119 = scmp.eq.s32.totalorder %s13, 1
      %p120 = por %p118, %p119
      %p121 = scmp.ne.s32.totalorder %s113, %s116
      %p122 = scmp.eq.s32.totalorder %s13, 0
      %p123 = por %p121, %p122
      %p124 = scmp.ne.s32.totalorder %s113, %s116
      %p125 = scmp.eq.s32.totalorder %s18, 1
      %p126 = por %p124, %p125
      %p127 = scmp.ne.s32.totalorder %s116, %s117
      %p128 = scmp.eq.s32.totalorder %s18, 0
      %p129 = por %p127, %p128
      %p130 = scmp.ne.s32.totalorder %s116, %s117
      %p131 = scmp.eq.s32.totalorder %s19, 1
      %p132 = por %p130, %p131
      %p134 = scmp.ne.s32.totalorder %s117, %s133
      %p135 = scmp.eq.s32.totalorder %s19, 0
      %p136 = por %p134, %p135
      %s137 = ssub.s32 %s20, %s32
      %s138 = ssub.s32 %s21, %s28
      %s139 = sor.u32 %s137, %s138
      %p140 = scmp.eq.s32.totalorder %s139, 0
      %s142 = sadd.s32 %s141, 1
      %s143 = scalar_select %p140, %s141, %s142
      %p146 = pneg %p140
      %p147 = scmp.eq.s32.totalorder %s13, 1
      %p148 = por %p146, %p147
      %p149 = scmp.ne.s32.totalorder %s141, %s144
      %p150 = scmp.eq.s32.totalorder %s13, 0
      %p151 = por %p149, %p150
      %p152 = scmp.ne.s32.totalorder %s141, %s144
      %p153 = scmp.eq.s32.totalorder %s18, 1
      %p154 = por %p152, %p153
      %p155 = scmp.ne.s32.totalorder %s144, %s145
      %p156 = scmp.eq.s32.totalorder %s18, 0
      %p157 = por %p155, %p156
      %p158 = scmp.ne.s32.totalorder %s144, %s145
      %p159 = scmp.eq.s32.totalorder %s19, 1
      %p160 = por %p158, %p159
      %p162 = scmp.ne.s32.totalorder %s145, %s161
      %p163 = scmp.eq.s32.totalorder %s19, 0
      %p164 = por %p162, %p163
      %p165 = scmp.le.s32.totalorder 1, %s13
      %p166 = scmp.lt.s32.totalorder %s13, 3
      %p167 = pnand %p165, %p166
      %p168 = pneg %p167
      // Predicated region
      $region9: #{tpu_custom_call.1} parent=5 // pred_check
        _
      $region10: #{tpu_custom_call.1} parent=5 // pred_check_branch
        %170 = sbr.rel (%p167) target = $region12
      $region11: #{tpu_custom_call.1} parent=5 // pred_region
        %s171 = ssub.s32 %s13, 1
        // Predicated region
        $region13: #{tpu_custom_call.1} parent=11 // pred_check
          %p172 = pneg %p77
        $region14: #{tpu_custom_call.1} parent=11 // pred_check_branch
          %174 = sbr.rel (%p172) target = $region16
        $region15: #{tpu_custom_call.1} parent=11 // pred_region
          %p175 = scmp.lt.s32.totalorder %s23, 0
          %s176 = scalar_select %p175, %s23, 0
          %s177 = smul.addr %s176, 2
          %s178 = scalar_lea.vmem %s1, %s177
        $region16: #{tpu_custom_call.1} parent=11 // pred_fallthru
          _
        // Predicated region
        $region17: #{tpu_custom_call.1} parent=11 // pred_check
          %p179 = pneg %p103
        $region18: #{tpu_custom_call.1} parent=11 // pred_check_branch
          %181 = sbr.rel (%p179) target = $region20
        $region19: #{tpu_custom_call.1} parent=11 // pred_region
          %p182 = scmp.lt.s32.totalorder %s23, 0
          %s183 = scalar_select %p182, %s23, 0
          %s184 = scalar_lea.vmem %s2, %s183
        $region20: #{tpu_custom_call.1} parent=11 // pred_fallthru
          _
        // Predicated region
        $region21: #{tpu_custom_call.1} parent=11 // pred_check
          %p185 = pneg %p129
        $region22: #{tpu_custom_call.1} parent=11 // pred_check_branch
          %187 = sbr.rel (%p185) target = $region24
        $region23: #{tpu_custom_call.1} parent=11 // pred_region
          %p188 = scmp.lt.s32.totalorder %s23, 0
          %s189 = scalar_select %p188, %s23, 0
          %s190 = scalar_lea.vmem %s3, %s189
        $region24: #{tpu_custom_call.1} parent=11 // pred_fallthru
          _
      $region12: #{tpu_custom_call.1} parent=5 // pred_fallthru
        _
      %p191 = scmp.lt.s32.totalorder %s13, 2
      // Predicated region
      $region25: #{tpu_custom_call.1} parent=5 // pred_check
        %p192 = pneg %p191
      $region26: #{tpu_custom_call.1} parent=5 // pred_check_branch
        %194 = sbr.rel (%p192) target = $region28
      $region27: #{tpu_custom_call.1} parent=5 // pred_region
        // Predicated region
        $region29: #{tpu_custom_call.1} parent=27 // pred_check
          %p195 = pneg %p45
        $region30: #{tpu_custom_call.1} parent=27 // pred_check_branch
          %197 = sbr.rel (%p195) target = $region32
        $region31: #{tpu_custom_call.1} parent=27 // pred_region
          %p198 = scmp.lt.s32.totalorder %s20, 1
          %s199 = scalar_select %p198, %s20, 1
          %s200 = smul.addr %s199, 72
          %s201 = smul.addr %s200, 8
          %s202 = scalar_lea.vmem %s0, %s201
        $region32: #{tpu_custom_call.1} parent=27 // pred_fallthru
          _
      $region28: #{tpu_custom_call.1} parent=5 // pred_fallthru
        _
      %p203 = scmp.le.s32.totalorder 1, %s13
      %p204 = scmp.lt.s32.totalorder %s13, 3
      %p205 = pnand %p203, %p204
      %p206 = pneg %p205
      // Predicated region
      $region33: #{tpu_custom_call.1} parent=5 // pred_check
        _
      $region34: #{tpu_custom_call.1} parent=5 // pred_check_branch
        %208 = sbr.rel (%p205) target = $region36
      $region35: #{tpu_custom_call.1} parent=5 // pred_region
        %s209 = ssub.s32 %s13, 1
        %p210 = scmp.lt.s32.totalorder %s22, 1
        %s211 = scalar_select %p210, %s22, 1
        %s212 = smul.addr %s211, 72
        %s213 = smul.addr %s212, 8
        %s214 = scalar_lea.vmem %s0, %s213
        %p215 = pneg %p51
        %p216 = pneg %p48
        %p217 = scmp.lt.s32.totalorder %s23, 0
        %s218 = scalar_select %p217, %s23, 0
        %s219 = smul.addr %s218, 2
        %s220 = scalar_lea.vmem %s1, %s219
        %p221 = pneg %p77
        %p222 = pneg %p74
        %p223 = scmp.lt.s32.totalorder %s23, 0
        %s224 = scalar_select %p223, %s23, 0
        %s225 = scalar_lea.vmem %s2, %s224
        %p226 = pneg %p103
        %p227 = pneg %p100
        %p228 = scmp.lt.s32.totalorder %s23, 0
        %s229 = scalar_select %p228, %s23, 0
        %s230 = scalar_lea.vmem %s3, %s229
        %p231 = pneg %p129
        %p232 = pneg %p126
        %p233 = pneg %p157
        %p234 = pneg %p154
        %s235 = sand.u32 %s144, 1
        %s236 = scalar_lea.sflag [#allocation3], %s235
        %s237 = sand.u32 %s144, 1
        %s238 = smul.addr %s237, 64
        %s239 = scalar_lea.vmem [#allocation2], %s238
        %p240 = scmp.lt.s32.totalorder %s22, 1
        %s241 = scalar_select %p240, %s22, 1
        %s242 = smul.addr %s241, 72
        %s243 = smul.addr %s242, 8
        %s244 = scalar_lea.vmem %s0, %s243
        %p245 = scmp.lt.s32.totalorder %s23, 0
        %s246 = scalar_select %p245, %s23, 0
        %s247 = smul.addr %s246, 2
        %s248 = scalar_lea.vmem %s1, %s247
        %p249 = scmp.lt.s32.totalorder %s23, 0
        %s250 = scalar_select %p249, %s23, 0
        %s251 = scalar_lea.vmem %s2, %s250
        %p252 = scmp.lt.s32.totalorder %s23, 0
        %s253 = scalar_select %p252, %s23, 0
        %s254 = scalar_lea.vmem %s3, %s253
        %v256 = vld [vmem:[%s244] sm:$0xff]
        %v257 = vld [vmem:[%s244 + $0x10] sm:$0xff]
        %v258 = vld [vmem:[%s244 + $0x20] sm:$0xff]
        %v259 = vld [vmem:[%s244 + $0x30] sm:$0xff]
        %v260 = vld [vmem:[%s244 + $0x40] sm:$0xff]
        %v261 = vld [vmem:[%s244 + $0x50] sm:$0xff]
        %v262 = vld [vmem:[%s244 + $0x60] sm:$0xff]
        %v263 = vld [vmem:[%s244 + $0x70] sm:$0xff]
        %v264 = vpack.c.bf16 %v257, %v256
        %v265 = vpack.c.bf16 %v259, %v258
        %v266 = vpack.c.bf16 %v261, %v260
        %v267 = vpack.c.bf16 %v263, %v262
        %v268 = vld [vmem:[%s248] sm:$0x3]
        %s269 = scalar_lea.vmem %s244, 144
        %v270 = vld [vmem:[%s269] sm:$0xff]
        %v271 = vld [vmem:[%s269 + $0x10] sm:$0xff]
        %v272 = vld [vmem:[%s269 + $0x20] sm:$0xff]
        %v273 = vld [vmem:[%s269 + $0x30] sm:$0xff]
        %v274 = vld [vmem:[%s269 + $0x40] sm:$0xff]
        %v275 = vld [vmem:[%s269 + $0x50] sm:$0xff]
        %v276 = vld [vmem:[%s269 + $0x60] sm:$0xff]
        %v277 = vld [vmem:[%s269 + $0x70] sm:$0xff]
        %v278 = vpack.c.bf16 %v271, %v270
        %v279 = vpack.c.bf16 %v273, %v272
        %v280 = vpack.c.bf16 %v275, %v274
        %v281 = vpack.c.bf16 %v277, %v276
        %s282 = scalar_lea.vmem %s248, 2
        %v283 = vld [vmem:[%s282] sm:$0x3]
        %vm284 = vcmask 31744
        %v286 = vsel %vm284, %v278, 0
        %v289 = vsel %vm284, %v279, 0
        %v292 = vsel %vm284, %v280, 0
        %v295 = vsel %vm284, %v281, 0
        %vm297 = vcmask 1041408
        %v299 = vsel %vm297, %v283, 0
        %301 = vmatprep.subr.bf16.mxu0 0
        %302 = vmatpush1.bf16.msra.mxu0 %v299
        %303 = vmatprep.subr.bf16.mxu0 0
        %304 = vmatpush1.bf16.msra.mxu0 0
        %305 = vmatprep.subr.bf16.mxu0 0
        %306 = vmatpush1.bf16.msra.mxu0 0
        %307 = vmatprep.subr.bf16.mxu0 0
        %308 = vmatpush1.bf16.msra.mxu0 0
        %309 = vmatprep.subr.bf16.mxu0 0
        %310 = vmatpush1.bf16.msra.mxu0 0
        %311 = vmatprep.subr.bf16.mxu0 0
        %312 = vmatpush1.bf16.msra.mxu0 0
        %313 = vmatprep.subr.bf16.mxu0 0
        %314 = vmatpush1.bf16.msra.mxu0 0
        %315 = vmatprep.subr.bf16.mxu0 0
        %316 = vmatpush1.bf16.msra.mxu0 0
        %317 = vmatprep.subr.bf16.mxu0 0
        %318 = vmatpush1.bf16.msra.mxu0 0
        %319 = vmatprep.subr.bf16.mxu0 0
        %320 = vmatpush1.bf16.msra.mxu0 0
        %321 = vmatprep.subr.bf16.mxu0 0
        %322 = vmatpush1.bf16.msra.mxu0 0
        %323 = vmatprep.subr.bf16.mxu0 0
        %324 = vmatpush1.bf16.msra.mxu0 0
        %325 = vmatprep.subr.bf16.mxu0 0
        %326 = vmatpush1.bf16.msra.mxu0 0
        %327 = vmatprep.subr.bf16.mxu0 0
        %328 = vmatpush1.bf16.msra.mxu0 0
        %329 = vmatprep.subr.bf16.mxu0 0
        %330 = vmatpush1.bf16.msra.mxu0 0
        %331 = vmatprep.subr.bf16.mxu0 0
        %332 = vmatpush1.bf16.msra.mxu0 0
        %333 = vmatprep.mubr.bf16.mxu0 0
        %334 = vmatmul.mubr.bf16.gmra.mrb[0].mxu0 %v286
        %v335 = vpop.f32.mrb[0].mxu0
        %v336 = vadd.f32 0.0, %v335
        %v337 = vpop.f32.mrb[0].mxu0
        %v338 = vpop.f32.mrb[0].mxu0
        %v339 = vadd.f32 0.0, %v338
        %v340 = vpop.f32.mrb[0].mxu0
        %341 = vmatprep.mubr.bf16.mxu0 0
        %342 = vmatmul.mubr.bf16.gmra.mrb[0].mxu0 %v289
        %v343 = vpop.f32.mrb[0].mxu0
        %v344 = vadd.f32 0.0, %v343
        %v345 = vpop.f32.mrb[0].mxu0
        %v346 = vpop.f32.mrb[0].mxu0
        %v347 = vadd.f32 0.0, %v346
        %v348 = vpop.f32.mrb[0].mxu0
        %349 = vmatprep.mubr.bf16.mxu0 0
        %350 = vmatmul.mubr.bf16.gmra.mrb[0].mxu0 %v292
        %v351 = vpop.f32.mrb[0].mxu0
        %v352 = vadd.f32 0.0, %v351
        %v353 = vpop.f32.mrb[0].mxu0
        %v354 = vpop.f32.mrb[0].mxu0
        %v355 = vadd.f32 0.0, %v354
        %v356 = vpop.f32.mrb[0].mxu0
        %357 = vmatprep.mubr.bf16.mxu0 0
        %358 = vmatmul.mubr.bf16.gmra.mrb[0].mxu0 %v295
        %v359 = vpop.f32.mrb[0].mxu0
        %v360 = vadd.f32 0.0, %v359
        %v361 = vpop.f32.mrb[0].mxu0
        %v362 = vpop.f32.mrb[0].mxu0
        %v363 = vadd.f32 0.0, %v362
        %v364 = vpop.f32.mrb[0].mxu0
        %365 = vdwg.mxu0
        %v367 = vsel %vm284, %v264, 0
        %v370 = vsel %vm284, %v265, 0
        %v373 = vsel %vm284, %v266, 0
        %v376 = vsel %vm284, %v267, 0
        %v379 = vsel %vm297, %v268, 0
        %381 = vmatprep.subr.bf16.mxu0 0
        %382 = vmatpush1.bf16.msra.mxu0 %v379
        %383 = vmatprep.subr.bf16.mxu0 0
        %384 = vmatpush1.bf16.msra.mxu0 0
        %385 = vmatprep.subr.bf16.mxu0 0
        %386 = vmatpush1.bf16.msra.mxu0 0
        %387 = vmatprep.subr.bf16.mxu0 0
        %388 = vmatpush1.bf16.msra.mxu0 0
        %389 = vmatprep.subr.bf16.mxu0 0
        %390 = vmatpush1.bf16.msra.mxu0 0
        %391 = vmatprep.subr.bf16.mxu0 0
        %392 = vmatpush1.bf16.msra.mxu0 0
        %393 = vmatprep.subr.bf16.mxu0 0
        %394 = vmatpush1.bf16.msra.mxu0 0
        %395 = vmatprep.subr.bf16.mxu0 0
        %396 = vmatpush1.bf16.msra.mxu0 0
        %397 = vmatprep.subr.bf16.mxu0 0
        %398 = vmatpush1.bf16.msra.mxu0 0
        %399 = vmatprep.subr.bf16.mxu0 0
        %400 = vmatpush1.bf16.msra.mxu0 0
        %401 = vmatprep.subr.bf16.mxu0 0
        %402 = vmatpush1.bf16.msra.mxu0 0
        %403 = vmatprep.subr.bf16.mxu0 0
        %404 = vmatpush1.bf16.msra.mxu0 0
        %405 = vmatprep.subr.bf16.mxu0 0
        %406 = vmatpush1.bf16.msra.mxu0 0
        %407 = vmatprep.subr.bf16.mxu0 0
        %408 = vmatpush1.bf16.msra.mxu0 0
        %409 = vmatprep.subr.bf16.mxu0 0
        %410 = vmatpush1.bf16.msra.mxu0 0
        %411 = vmatprep.subr.bf16.mxu0 0
        %412 = vmatpush1.bf16.msra.mxu0 0
        %413 = vmatprep.mubr.bf16.mxu0 0
        %414 = vmatmul.mubr.bf16.gmra.mrb[0].mxu0 %v367
        %v415 = vpop.f32.mrb[0].mxu0
        %v416 = vadd.f32 %v336, %v415
        %v417 = vpop.f32.mrb[0].mxu0
        %v418 = vpop.f32.mrb[0].mxu0
        %v419 = vadd.f32 %v339, %v418
        %v420 = vpop.f32.mrb[0].mxu0
        %421 = vmatprep.mubr.bf16.mxu0 0
        %422 = vmatmul.mubr.bf16.gmra.mrb[0].mxu0 %v370
        %v423 = vpop.f32.mrb[0].mxu0
        %v424 = vadd.f32 %v344, %v423
        %v425 = vpop.f32.mrb[0].mxu0
        %v426 = vpop.f32.mrb[0].mxu0
        %v427 = vadd.f32 %v347, %v426
        %v428 = vpop.f32.mrb[0].mxu0
        %429 = vmatprep.mubr.bf16.mxu0 0
        %430 = vmatmul.mubr.bf16.gmra.mrb[0].mxu0 %v373
        %v431 = vpop.f32.mrb[0].mxu0
        %v432 = vadd.f32 %v352, %v431
        %v433 = vpop.f32.mrb[0].mxu0
        %v434 = vpop.f32.mrb[0].mxu0
        %v435 = vadd.f32 %v355, %v434
        %v436 = vpop.f32.mrb[0].mxu0
        %437 = vmatprep.mubr.bf16.mxu0 0
        %438 = vmatmul.mubr.bf16.gmra.mrb[0].mxu0 %v376
        %v439 = vpop.f32.mrb[0].mxu0
        %v440 = vadd.f32 %v360, %v439
        %v441 = vpop.f32.mrb[0].mxu0
        %v442 = vpop.f32.mrb[0].mxu0
        %v443 = vadd.f32 %v363, %v442
        %v444 = vpop.f32.mrb[0].mxu0
        %445 = vdwg.mxu0
        %v446 = vld [vmem:[%s244 + $0x1] sm:$0xff]
        %v447 = vld [vmem:[%s244 + $0x11] sm:$0xff]
        %v448 = vld [vmem:[%s244 + $0x21] sm:$0xff]
        %v449 = vld [vmem:[%s244 + $0x31] sm:$0xff]
        %v450 = vld [vmem:[%s244 + $0x41] sm:$0xff]
        %v451 = vld [vmem:[%s244 + $0x51] sm:$0xff]
        %v452 = vld [vmem:[%s244 + $0x61] sm:$0xff]
        %v453 = vld [vmem:[%s244 + $0x71] sm:$0xff]
        %v454 = vpack.c.bf16 %v447, %v446
        %v455 = vpack.c.bf16 %v449, %v448
        %v456 = vpack.c.bf16 %v451, %v450
        %v457 = vpack.c.bf16 %v453, %v452
        %s458 = scalar_lea.vmem %s248, 4
        %v459 = vld [vmem:[%s458] sm:$0x3]
        %v461 = vsel %vm284, %v454, 0
        %v464 = vsel %vm284, %v455, 0
        %v467 = vsel %vm284, %v456, 0
        %v470 = vsel %vm284, %v457, 0
        %v473 = vsel %vm297, %v459, 0
        %475 = vmatprep.subr.bf16.mxu0 0
        %476 = vmatpush1.bf16.msra.mxu0 %v473
        %477 = vmatprep.subr.bf16.mxu0 0
        %478 = vmatpush1.bf16.msra.mxu0 0
        %479 = vmatprep.subr.bf16.mxu0 0
        %480 = vmatpush1.bf16.msra.mxu0 0
        %481 = vmatprep.subr.bf16.mxu0 0
        %482 = vmatpush1.bf16.msra.mxu0 0
        %483 = vmatprep.subr.bf16.mxu0 0
        %484 = vmatpush1.bf16.msra.mxu0 0
        %485 = vmatprep.subr.bf16.mxu0 0
        %486 = vmatpush1.bf16.msra.mxu0 0
        %487 = vmatprep.subr.bf16.mxu0 0
        %488 = vmatpush1.bf16.msra.mxu0 0
        %489 = vmatprep.subr.bf16.mxu0 0
        %490 = vmatpush1.bf16.msra.mxu0 0
        %491 = vmatprep.subr.bf16.mxu0 0
        %492 = vmatpush1.bf16.msra.mxu0 0
        %493 = vmatprep.subr.bf16.mxu0 0
        %494 = vmatpush1.bf16.msra.mxu0 0
        %495 = vmatprep.subr.bf16.mxu0 0
        %496 = vmatpush1.bf16.msra.mxu0 0
        %497 = vmatprep.subr.bf16.mxu0 0
        %498 = vmatpush1.bf16.msra.mxu0 0
        %499 = vmatprep.subr.bf16.mxu0 0
        %500 = vmatpush1.bf16.msra.mxu0 0
        %501 = vmatprep.subr.bf16.mxu0 0
        %502 = vmatpush1.bf16.msra.mxu0 0
        %503 = vmatprep.subr.bf16.mxu0 0
        %504 = vmatpush1.bf16.msra.mxu0 0
        %505 = vmatprep.subr.bf16.mxu0 0
        %506 = vmatpush1.bf16.msra.mxu0 0
        %507 = vmatprep.mubr.bf16.mxu0 0
        %508 = vmatmul.mubr.bf16.gmra.mrb[0].mxu0 %v461
        %v509 = vpop.f32.mrb[0].mxu0
        %v510 = vadd.f32 0.0, %v509
        %v511 = vpop.f32.mrb[0].mxu0
        %v512 = vpop.f32.mrb[0].mxu0
        %v513 = vadd.f32 0.0, %v512
        %v514 = vpop.f32.mrb[0].mxu0
        %515 = vmatprep.mubr.bf16.mxu0 0
        %516 = vmatmul.mubr.bf16.gmra.mrb[0].mxu0 %v464
        %v517 = vpop.f32.mrb[0].mxu0
        %v518 = vadd.f32 0.0, %v517
        %v519 = vpop.f32.mrb[0].mxu0
        %v520 = vpop.f32.mrb[0].mxu0
        %v521 = vadd.f32 0.0, %v520
        %v522 = vpop.f32.mrb[0].mxu0
        %523 = vmatprep.mubr.bf16.mxu0 0
        %524 = vmatmul.mubr.bf16.gmra.mrb[0].mxu0 %v467
        %v525 = vpop.f32.mrb[0].mxu0
        %v526 = vadd.f32 0.0, %v525
        %v527 = vpop.f32.mrb[0].mxu0
        %v528 = vpop.f32.mrb[0].mxu0
        %v529 = vadd.f32 0.0, %v528
        %v530 = vpop.f32.mrb[0].mxu0
        %531 = vmatprep.mubr.bf16.mxu0 0
        %532 = vmatmul.mubr.bf16.gmra.mrb[0].mxu0 %v470
        %v533 = vpop.f32.mrb[0].mxu0
        %v534 = vadd.f32 0.0, %v533
        %v535 = vpop.f32.mrb[0].mxu0
        %v536 = vpop.f32.mrb[0].mxu0
        %v537 = vadd.f32 0.0, %v536
        %v538 = vpop.f32.mrb[0].mxu0
        %539 = vdwg.mxu0
        %v540 = vadd.f32 %v416, %v510
        %v541 = vadd.f32 %v419, %v513
        %v542 = vadd.f32 %v424, %v518
        %v543 = vadd.f32 %v427, %v521
        %v544 = vadd.f32 %v432, %v526
        %v545 = vadd.f32 %v435, %v529
        %v546 = vadd.f32 %v440, %v534
        %v547 = vadd.f32 %v443, %v537
        %s548 = scalar_lea.vmem %s244, 288
        %v549 = vld [vmem:[%s548] sm:$0xff]
        %v550 = vld [vmem:[%s548 + $0x10] sm:$0xff]
        %v551 = vld [vmem:[%s548 + $0x20] sm:$0xff]
        %v552 = vld [vmem:[%s548 + $0x30] sm:$0xff]
        %v553 = vld [vmem:[%s548 + $0x40] sm:$0xff]
        %v554 = vld [vmem:[%s548 + $0x50] sm:$0xff]
        %v555 = vld [vmem:[%s548 + $0x60] sm:$0xff]
        %v556 = vld [vmem:[%s548 + $0x70] sm:$0xff]
        %v557 = vpack.c.bf16 %v550, %v549
        %v558 = vpack.c.bf16 %v552, %v551
        %v559 = vpack.c.bf16 %v554, %v553
        %v560 = vpack.c.bf16 %v556, %v555
        %s561 = scalar_lea.vmem %s248, 6
        %v562 = vld [vmem:[%s561] sm:$0x3]
        %v564 = vsel %vm284, %v557, 0
        %v567 = vsel %vm284, %v558, 0
        %v570 = vsel %vm284, %v559, 0
        %v573 = vsel %vm284, %v560, 0
        %v576 = vsel %vm297, %v562, 0
        %578 = vmatprep.subr.bf16.mxu0 0
        %579 = vmatpush1.bf16.msra.mxu0 %v576
        %580 = vmatprep.subr.bf16.mxu0 0
        %581 = vmatpush1.bf16.msra.mxu0 0
        %582 = vmatprep.subr.bf16.mxu0 0
        %583 = vmatpush1.bf16.msra.mxu0 0
        %584 = vmatprep.subr.bf16.mxu0 0
        %585 = vmatpush1.bf16.msra.mxu0 0
        %586 = vmatprep.subr.bf16.mxu0 0
        %587 = vmatpush1.bf16.msra.mxu0 0
        %588 = vmatprep.subr.bf16.mxu0 0
        %589 = vmatpush1.bf16.msra.mxu0 0
        %590 = vmatprep.subr.bf16.mxu0 0
        %591 = vmatpush1.bf16.msra.mxu0 0
        %592 = vmatprep.subr.bf16.mxu0 0
        %593 = vmatpush1.bf16.msra.mxu0 0
        %594 = vmatprep.subr.bf16.mxu0 0
        %595 = vmatpush1.bf16.msra.mxu0 0
        %596 = vmatprep.subr.bf16.mxu0 0
        %597 = vmatpush1.bf16.msra.mxu0 0
        %598 = vmatprep.subr.bf16.mxu0 0
        %599 = vmatpush1.bf16.msra.mxu0 0
        %600 = vmatprep.subr.bf16.mxu0 0
        %601 = vmatpush1.bf16.msra.mxu0 0
        %602 = vmatprep.subr.bf16.mxu0 0
        %603 = vmatpush1.bf16.msra.mxu0 0
        %604 = vmatprep.subr.bf16.mxu0 0
        %605 = vmatpush1.bf16.msra.mxu0 0
        %606 = vmatprep.subr.bf16.mxu0 0
        %607 = vmatpush1.bf16.msra.mxu0 0
        %608 = vmatprep.subr.bf16.mxu0 0
        %609 = vmatpush1.bf16.msra.mxu0 0
        %610 = vmatprep.mubr.bf16.mxu0 0
        %611 = vmatmul.mubr.bf16.gmra.mrb[0].mxu0 %v564
        %v612 = vpop.f32.mrb[0].mxu0
        %v613 = vadd.f32 0.0, %v612
        %v614 = vpop.f32.mrb[0].mxu0
        %v615 = vpop.f32.mrb[0].mxu0
        %v616 = vadd.f32 0.0, %v615
        %v617 = vpop.f32.mrb[0].mxu0
        %618 = vmatprep.mubr.bf16.mxu0 0
        %619 = vmatmul.mubr.bf16.gmra.mrb[0].mxu0 %v567
        %v620 = vpop.f32.mrb[0].mxu0
        %v621 = vadd.f32 0.0, %v620
        %v622 = vpop.f32.mrb[0].mxu0
        %v623 = vpop.f32.mrb[0].mxu0
        %v624 = vadd.f32 0.0, %v623
        %v625 = vpop.f32.mrb[0].mxu0
        %626 = vmatprep.mubr.bf16.mxu0 0
        %627 = vmatmul.mubr.bf16.gmra.mrb[0].mxu0 %v570
        %v628 = vpop.f32.mrb[0].mxu0
        %v629 = vadd.f32 0.0, %v628
        %v630 = vpop.f32.mrb[0].mxu0
        %v631 = vpop.f32.mrb[0].mxu0
        %v632 = vadd.f32 0.0, %v631
        %v633 = vpop.f32.mrb[0].mxu0
        %634 = vmatprep.mubr.bf16.mxu0 0
        %635 = vmatmul.mubr.bf16.gmra.mrb[0].mxu0 %v573
        %v636 = vpop.f32.mrb[0].mxu0
        %v637 = vadd.f32 0.0, %v636
        %v638 = vpop.f32.mrb[0].mxu0
        %v639 = vpop.f32.mrb[0].mxu0
        %v640 = vadd.f32 0.0, %v639
        %v641 = vpop.f32.mrb[0].mxu0
        %642 = vdwg.mxu0
        %v643 = vadd.f32 %v540, %v613
        %v644 = vadd.f32 %v541, %v616
        %v645 = vadd.f32 %v542, %v621
        %v646 = vadd.f32 %v543, %v624
        %v647 = vadd.f32 %v544, %v629
        %v648 = vadd.f32 %v545, %v632
        %v649 = vadd.f32 %v546, %v637
        %v650 = vadd.f32 %v547, %v640
        %s651 = scalar_lea.vmem %s244, 432
        %v652 = vld [vmem:[%s651] sm:$0xff]
        %v653 = vld [vmem:[%s651 + $0x10] sm:$0xff]
        %v654 = vld [vmem:[%s651 + $0x20] sm:$0xff]
        %v655 = vld [vmem:[%s651 + $0x30] sm:$0xff]
        %v656 = vld [vmem:[%s651 + $0x40] sm:$0xff]
        %v657 = vld [vmem:[%s651 + $0x50] sm:$0xff]
        %v658 = vld [vmem:[%s651 + $0x60] sm:$0xff]
        %v659 = vld [vmem:[%s651 + $0x70] sm:$0xff]
        %v660 = vpack.c.bf16 %v653, %v652
        %v661 = vpack.c.bf16 %v655, %v654
        %v662 = vpack.c.bf16 %v657, %v656
        %v663 = vpack.c.bf16 %v659, %v658
        %s664 = scalar_lea.vmem %s248, 8
        %v665 = vld [vmem:[%s664] sm:$0x3]
        %v667 = vsel %vm284, %v660, 0
        %v670 = vsel %vm284, %v661, 0
        %v673 = vsel %vm284, %v662, 0
        %v676 = vsel %vm284, %v663, 0
        %v679 = vsel %vm297, %v665, 0
        %681 = vmatprep.subr.bf16.mxu0 0
        %682 = vmatpush1.bf16.msra.mxu0 %v679
        %683 = vmatprep.subr.bf16.mxu0 0
        %684 = vmatpush1.bf16.msra.mxu0 0
        %685 = vmatprep.subr.bf16.mxu0 0
        %686 = vmatpush1.bf16.msra.mxu0 0
        %687 = vmatprep.subr.bf16.mxu0 0
        %688 = vmatpush1.bf16.msra.mxu0 0
        %689 = vmatprep.subr.bf16.mxu0 0
        %690 = vmatpush1.bf16.msra.mxu0 0
        %691 = vmatprep.subr.bf16.mxu0 0
        %692 = vmatpush1.bf16.msra.mxu0 0
        %693 = vmatprep.subr.bf16.mxu0 0
        %694 = vmatpush1.bf16.msra.mxu0 0
        %695 = vmatprep.subr.bf16.mxu0 0
        %696 = vmatpush1.bf16.msra.mxu0 0
        %697 = vmatprep.subr.bf16.mxu0 0
        %698 = vmatpush1.bf16.msra.mxu0 0
        %699 = vmatprep.subr.bf16.mxu0 0
        %700 = vmatpush1.bf16.msra.mxu0 0
        %701 = vmatprep.subr.bf16.mxu0 0
        %702 = vmatpush1.bf16.msra.mxu0 0
        %703 = vmatprep.subr.bf16.mxu0 0
        %704 = vmatpush1.bf16.msra.mxu0 0
        %705 = vmatprep.subr.bf16.mxu0 0
        %706 = vmatpush1.bf16.msra.mxu0 0
        %707 = vmatprep.subr.bf16.mxu0 0
        %708 = vmatpush1.bf16.msra.mxu0 0
        %709 = vmatprep.subr.bf16.mxu0 0
        %710 = vmatpush1.bf16.msra.mxu0 0
        %711 = vmatprep.subr.bf16.mxu0 0
        %712 = vmatpush1.bf16.msra.mxu0 0
        %713 = vmatprep.mubr.bf16.mxu0 0
        %714 = vmatmul.mubr.bf16.gmra.mrb[0].mxu0 %v667
        %v715 = vpop.f32.mrb[0].mxu0
        %v716 = vadd.f32 0.0, %v715
        %v717 = vpop.f32.mrb[0].mxu0
        %v718 = vpop.f32.mrb[0].mxu0
        %v719 = vadd.f32 0.0, %v718
        %v720 = vpop.f32.mrb[0].mxu0
        %721 = vmatprep.mubr.bf16.mxu0 0
        %722 = vmatmul.mubr.bf16.gmra.mrb[0].mxu0 %v670
        %v723 = vpop.f32.mrb[0].mxu0
        %v724 = vadd.f32 0.0, %v723
        %v725 = vpop.f32.mrb[0].mxu0
        %v726 = vpop.f32.mrb[0].mxu0
        %v727 = vadd.f32 0.0, %v726
        %v728 = vpop.f32.mrb[0].mxu0
        %729 = vmatprep.mubr.bf16.mxu0 0
        %730 = vmatmul.mubr.bf16.gmra.mrb[0].mxu0 %v673
        %v731 = vpop.f32.mrb[0].mxu0
        %v732 = vadd.f32 0.0, %v731
        %v733 = vpop.f32.mrb[0].mxu0
        %v734 = vpop.f32.mrb[0].mxu0
        %v735 = vadd.f32 0.0, %v734
        %v736 = vpop.f32.mrb[0].mxu0
        %737 = vmatprep.mubr.bf16.mxu0 0
        %738 = vmatmul.mubr.bf16.gmra.mrb[0].mxu0 %v676
        %v739 = vpop.f32.mrb[0].mxu0
        %v740 = vadd.f32 0.0, %v739
        %v741 = vpop.f32.mrb[0].mxu0
        %v742 = vpop.f32.mrb[0].mxu0
        %v743 = vadd.f32 0.0, %v742
        %v744 = vpop.f32.mrb[0].mxu0
        %745 = vdwg.mxu0
        %v746 = vadd.f32 %v643, %v716
        %v747 = vadd.f32 %v644, %v719
        %v748 = vadd.f32 %v645, %v724
        %v749 = vadd.f32 %v646, %v727
        %v750 = vadd.f32 %v647, %v732
        %v751 = vadd.f32 %v648, %v735
        %v752 = vadd.f32 %v649, %v740
        %v753 = vadd.f32 %v650, %v743
        %v754 = vld [vmem:[%s548 + $0x1] sm:$0xff]
        %v755 = vld [vmem:[%s548 + $0x11] sm:$0xff]
        %v756 = vld [vmem:[%s548 + $0x21] sm:$0xff]
        %v757 = vld [vmem:[%s548 + $0x31] sm:$0xff]
        %v758 = vld [vmem:[%s548 + $0x41] sm:$0xff]
        %v759 = vld [vmem:[%s548 + $0x51] sm:$0xff]
        %v760 = vld [vmem:[%s548 + $0x61] sm:$0xff]
        %v761 = vld [vmem:[%s548 + $0x71] sm:$0xff]
        %v762 = vpack.c.bf16 %v755, %v754
        %v763 = vpack.c.bf16 %v757, %v756
        %v764 = vpack.c.bf16 %v759, %v758
        %v765 = vpack.c.bf16 %v761, %v760
        %s766 = scalar_lea.vmem %s248, 10
        %v767 = vld [vmem:[%s766] sm:$0x3]
        %v769 = vsel %vm284, %v762, 0
        %v772 = vsel %vm284, %v763, 0
        %v775 = vsel %vm284, %v764, 0
        %v778 = vsel %vm284, %v765, 0
        %v781 = vsel %vm297, %v767, 0
        %783 = vmatprep.subr.bf16.mxu0 0
        %784 = vmatpush1.bf16.msra.mxu0 %v781
        %785 = vmatprep.subr.bf16.mxu0 0
        %786 = vmatpush1.bf16.msra.mxu0 0
        %787 = vmatprep.subr.bf16.mxu0 0
        %788 = vmatpush1.bf16.msra.mxu0 0
        %789 = vmatprep.subr.bf16.mxu0 0
        %790 = vmatpush1.bf16.msra.mxu0 0
        %791 = vmatprep.subr.bf16.mxu0 0
        %792 = vmatpush1.bf16.msra.mxu0 0
        %793 = vmatprep.subr.bf16.mxu0 0
        %794 = vmatpush1.bf16.msra.mxu0 0
        %795 = vmatprep.subr.bf16.mxu0 0
        %796 = vmatpush1.bf16.msra.mxu0 0
        %797 = vmatprep.subr.bf16.mxu0 0
        %798 = vmatpush1.bf16.msra.mxu0 0
        %799 = vmatprep.subr.bf16.mxu0 0
        %800 = vmatpush1.bf16.msra.mxu0 0
        %801 = vmatprep.subr.bf16.mxu0 0
        %802 = vmatpush1.bf16.msra.mxu0 0
        %803 = vmatprep.subr.bf16.mxu0 0
        %804 = vmatpush1.bf16.msra.mxu0 0
        %805 = vmatprep.subr.bf16.mxu0 0
        %806 = vmatpush1.bf16.msra.mxu0 0
        %807 = vmatprep.subr.bf16.mxu0 0
        %808 = vmatpush1.bf16.msra.mxu0 0
        %809 = vmatprep.subr.bf16.mxu0 0
        %810 = vmatpush1.bf16.msra.mxu0 0
        %811 = vmatprep.subr.bf16.mxu0 0
        %812 = vmatpush1.bf16.msra.mxu0 0
        %813 = vmatprep.subr.bf16.mxu0 0
        %814 = vmatpush1.bf16.msra.mxu0 0
        %815 = vmatprep.mubr.bf16.mxu0 0
        %816 = vmatmul.mubr.bf16.gmra.mrb[0].mxu0 %v769
        %v817 = vpop.f32.mrb[0].mxu0
        %v818 = vadd.f32 0.0, %v817
        %v819 = vpop.f32.mrb[0].mxu0
        %v820 = vpop.f32.mrb[0].mxu0
        %v821 = vadd.f32 0.0, %v820
        %v822 = vpop.f32.mrb[0].mxu0
        %823 = vmatprep.mubr.bf16.mxu0 0
        %824 = vmatmul.mubr.bf16.gmra.mrb[0].mxu0 %v772
        %v825 = vpop.f32.mrb[0].mxu0
        %v826 = vadd.f32 0.0, %v825
        %v827 = vpop.f32.mrb[0].mxu0
        %v828 = vpop.f32.mrb[0].mxu0
        %v829 = vadd.f32 0.0, %v828
        %v830 = vpop.f32.mrb[0].mxu0
        %831 = vmatprep.mubr.bf16.mxu0 0
        %832 = vmatmul.mubr.bf16.gmra.mrb[0].mxu0 %v775
        %v833 = vpop.f32.mrb[0].mxu0
        %v834 = vadd.f32 0.0, %v833
        %v835 = vpop.f32.mrb[0].mxu0
        %v836 = vpop.f32.mrb[0].mxu0
        %v837 = vadd.f32 0.0, %v836
        %v838 = vpop.f32.mrb[0].mxu0
        %839 = vmatprep.mubr.bf16.mxu0 0
        %840 = vmatmul.mubr.bf16.gmra.mrb[0].mxu0 %v778
        %v841 = vpop.f32.mrb[0].mxu0
        %v842 = vadd.f32 0.0, %v841
        %v843 = vpop.f32.mrb[0].mxu0
        %v844 = vpop.f32.mrb[0].mxu0
        %v845 = vadd.f32 0.0, %v844
        %v846 = vpop.f32.mrb[0].mxu0
        %847 = vdwg.mxu0
        %v848 = vadd.f32 %v746, %v818
        %v849 = vadd.f32 %v747, %v821
        %v850 = vadd.f32 %v748, %v826
        %v851 = vadd.f32 %v749, %v829
        %v852 = vadd.f32 %v750, %v834
        %v853 = vadd.f32 %v751, %v837
        %v854 = vadd.f32 %v752, %v842
        %v855 = vadd.f32 %v753, %v845
        %s856 = scalar_lea.vmem %s244, 16
        %v857 = vld [vmem:[%s856] sm:$0xff]
        %v858 = vld [vmem:[%s856 + $0x10] sm:$0xff]
        %v859 = vld [vmem:[%s856 + $0x20] sm:$0xff]
        %v860 = vld [vmem:[%s856 + $0x30] sm:$0xff]
        %v861 = vld [vmem:[%s856 + $0x40] sm:$0xff]
        %v862 = vld [vmem:[%s856 + $0x50] sm:$0xff]
        %v863 = vld [vmem:[%s856 + $0x60] sm:$0xff]
        %v864 = vld [vmem:[%s856 + $0x70] sm:$0xff]
        %v865 = vpack.c.bf16 %v858, %v857
        %v866 = vpack.c.bf16 %v860, %v859
        %v867 = vpack.c.bf16 %v862, %v861
        %v868 = vpack.c.bf16 %v864, %v863
        %s869 = scalar_lea.vmem %s248, 12
        %v870 = vld [vmem:[%s869] sm:$0x3]
        %v872 = vsel %vm284, %v865, 0
        %v875 = vsel %vm284, %v866, 0
        %v878 = vsel %vm284, %v867, 0
        %v881 = vsel %vm284, %v868, 0
        %v884 = vsel %vm297, %v870, 0
        %886 = vmatprep.subr.bf16.mxu0 0
        %887 = vmatpush1.bf16.msra.mxu0 %v884
        %888 = vmatprep.subr.bf16.mxu0 0
        %889 = vmatpush1.bf16.msra.mxu0 0
        %890 = vmatprep.subr.bf16.mxu0 0
        %891 = vmatpush1.bf16.msra.mxu0 0
        %892 = vmatprep.subr.bf16.mxu0 0
        %893 = vmatpush1.bf16.msra.mxu0 0
        %894 = vmatprep.subr.bf16.mxu0 0
        %895 = vmatpush1.bf16.msra.mxu0 0
        %896 = vmatprep.subr.bf16.mxu0 0
        %897 = vmatpush1.bf16.msra.mxu0 0
        %898 = vmatprep.subr.bf16.mxu0 0
        %899 = vmatpush1.bf16.msra.mxu0 0
        %900 = vmatprep.subr.bf16.mxu0 0
        %901 = vmatpush1.bf16.msra.mxu0 0
        %902 = vmatprep.subr.bf16.mxu0 0
        %903 = vmatpush1.bf16.msra.mxu0 0
        %904 = vmatprep.subr.bf16.mxu0 0
        %905 = vmatpush1.bf16.msra.mxu0 0
        %906 = vmatprep.subr.bf16.mxu0 0
        %907 = vmatpush1.bf16.msra.mxu0 0
        %908 = vmatprep.subr.bf16.mxu0 0
        %909 = vmatpush1.bf16.msra.mxu0 0
        %910 = vmatprep.subr.bf16.mxu0 0
        %911 = vmatpush1.bf16.msra.mxu0 0
        %912 = vmatprep.subr.bf16.mxu0 0
        %913 = vmatpush1.bf16.msra.mxu0 0
        %914 = vmatprep.subr.bf16.mxu0 0
        %915 = vmatpush1.bf16.msra.mxu0 0
        %916 = vmatprep.subr.bf16.mxu0 0
        %917 = vmatpush1.bf16.msra.mxu0 0
        %918 = vmatprep.mubr.bf16.mxu0 0
        %919 = vmatmul.mubr.bf16.gmra.mrb[0].mxu0 %v872
        %v920 = vpop.f32.mrb[0].mxu0
        %v921 = vadd.f32 0.0, %v920
        %v922 = vpop.f32.mrb[0].mxu0
        %v923 = vpop.f32.mrb[0].mxu0
        %v924 = vadd.f32 0.0, %v923
        %v925 = vpop.f32.mrb[0].mxu0
        %926 = vmatprep.mubr.bf16.mxu0 0
        %927 = vmatmul.mubr.bf16.gmra.mrb[0].mxu0 %v875
        %v928 = vpop.f32.mrb[0].mxu0
        %v929 = vadd.f32 0.0, %v928
        %v930 = vpop.f32.mrb[0].mxu0
        %v931 = vpop.f32.mrb[0].mxu0
        %v932 = vadd.f32 0.0, %v931
        %v933 = vpop.f32.mrb[0].mxu0
        %934 = vmatprep.mubr.bf16.mxu0 0
        %935 = vmatmul.mubr.bf16.gmra.mrb[0].mxu0 %v878
        %v936 = vpop.f32.mrb[0].mxu0
        %v937 = vadd.f32 0.0, %v936
        %v938 = vpop.f32.mrb[0].mxu0
        %v939 = vpop.f32.mrb[0].mxu0
        %v940 = vadd.f32 0.0, %v939
        %v941 = vpop.f32.mrb[0].mxu0
        %942 = vmatprep.mubr.bf16.mxu0 0
        %943 = vmatmul.mubr.bf16.gmra.mrb[0].mxu0 %v881
        %v944 = vpop.f32.mrb[0].mxu0
        %v945 = vadd.f32 0.0, %v944
        %v946 = vpop.f32.mrb[0].mxu0
        %v947 = vpop.f32.mrb[0].mxu0
        %v948 = vadd.f32 0.0, %v947
        %v949 = vpop.f32.mrb[0].mxu0
        %950 = vdwg.mxu0
        %v951 = vadd.f32 %v848, %v921
        %v952 = vadd.f32 %v849, %v924
        %v953 = vadd.f32 %v850, %v929
        %v954 = vadd.f32 %v851, %v932
        %v955 = vadd.f32 %v852, %v937
        %v956 = vadd.f32 %v853, %v940
        %v957 = vadd.f32 %v854, %v945
        %v958 = vadd.f32 %v855, %v948
        %s959 = scalar_lea.vmem %s244, 160
        %v960 = vld [vmem:[%s959] sm:$0xff]
        %v961 = vld [vmem:[%s959 + $0x10] sm:$0xff]
        %v962 = vld [vmem:[%s959 + $0x20] sm:$0xff]
        %v963 = vld [vmem:[%s959 + $0x30] sm:$0xff]
        %v964 = vld [vmem:[%s959 + $0x40] sm:$0xff]
        %v965 = vld [vmem:[%s959 + $0x50] sm:$0xff]
        %v966 = vld [vmem:[%s959 + $0x60] sm:$0xff]
        %v967 = vld [vmem:[%s959 + $0x70] sm:$0xff]
        %v968 = vpack.c.bf16 %v961, %v960
        %v969 = vpack.c.bf16 %v963, %v962
        %v970 = vpack.c.bf16 %v965, %v964
        %v971 = vpack.c.bf16 %v967, %v966
        %s972 = scalar_lea.vmem %s248, 14
        %v973 = vld [vmem:[%s972] sm:$0x3]
        %v975 = vsel %vm284, %v968, 0
        %v978 = vsel %vm284, %v969, 0
        %v981 = vsel %vm284, %v970, 0
        %v984 = vsel %vm284, %v971, 0
        %v987 = vsel %vm297, %v973, 0
        %989 = vmatprep.subr.bf16.mxu0 0
        %990 = vmatpush1.bf16.msra.mxu0 %v987
        %991 = vmatprep.subr.bf16.mxu0 0
        %992 = vmatpush1.bf16.msra.mxu0 0
        %993 = vmatprep.subr.bf16.mxu0 0
        %994 = vmatpush1.bf16.msra.mxu0 0
        %995 = vmatprep.subr.bf16.mxu0 0
        %996 = vmatpush1.bf16.msra.mxu0 0
        %997 = vmatprep.subr.bf16.mxu0 0
        %998 = vmatpush1.bf16.msra.mxu0 0
        %999 = vmatprep.subr.bf16.mxu0 0
        %1000 = vmatpush1.bf16.msra.mxu0 0
        %1001 = vmatprep.subr.bf16.mxu0 0
        %1002 = vmatpush1.bf16.msra.mxu0 0
        %1003 = vmatprep.subr.bf16.mxu0 0
        %1004 = vmatpush1.bf16.msra.mxu0 0
        %1005 = vmatprep.subr.bf16.mxu0 0
        %1006 = vmatpush1.bf16.msra.mxu0 0
        %1007 = vmatprep.subr.bf16.mxu0 0
        %1008 = vmatpush1.bf16.msra.mxu0 0
        %1009 = vmatprep.subr.bf16.mxu0 0
        %1010 = vmatpush1.bf16.msra.mxu0 0
        %1011 = vmatprep.subr.bf16.mxu0 0
        %1012 = vmatpush1.bf16.msra.mxu0 0
        %1013 = vmatprep.subr.bf16.mxu0 0
        %1014 = vmatpush1.bf16.msra.mxu0 0
        %1015 = vmatprep.subr.bf16.mxu0 0
        %1016 = vmatpush1.bf16.msra.mxu0 0
        %1017 = vmatprep.subr.bf16.mxu0 0
        %1018 = vmatpush1.bf16.msra.mxu0 0
        %1019 = vmatprep.subr.bf16.mxu0 0
        %1020 = vmatpush1.bf16.msra.mxu0 0
        %1021 = vmatprep.mubr.bf16.mxu0 0
        %1022 = vmatmul.mubr.bf16.gmra.mrb[0].mxu0 %v975
        %v1023 = vpop.f32.mrb[0].mxu0
        %v1024 = vadd.f32 0.0, %v1023
        %v1025 = vpop.f32.mrb[0].mxu0
        %v1026 = vpop.f32.mrb[0].mxu0
        %v1027 = vadd.f32 0.0, %v1026
        %v1028 = vpop.f32.mrb[0].mxu0
        %1029 = vmatprep.mubr.bf16.mxu0 0
        %1030 = vmatmul.mubr.bf16.gmra.mrb[0].mxu0 %v978
        %v1031 = vpop.f32.mrb[0].mxu0
        %v1032 = vadd.f32 0.0, %v1031
        %v1033 = vpop.f32.mrb[0].mxu0
        %v1034 = vpop.f32.mrb[0].mxu0
        %v1035 = vadd.f32 0.0, %v1034
        %v1036 = vpop.f32.mrb[0].mxu0
        %1037 = vmatprep.mubr.bf16.mxu0 0
        %1038 = vmatmul.mubr.bf16.gmra.mrb[0].mxu0 %v981
        %v1039 = vpop.f32.mrb[0].mxu0
        %v1040 = vadd.f32 0.0, %v1039
        %v1041 = vpop.f32.mrb[0].mxu0
        %v1042 = vpop.f32.mrb[0].mxu0
        %v1043 = vadd.f32 0.0, %v1042
        %v1044 = vpop.f32.mrb[0].mxu0
        %1045 = vmatprep.mubr.bf16.mxu0 0
        %1046 = vmatmul.mubr.bf16.gmra.mrb[0].mxu0 %v984
        %v1047 = vpop.f32.mrb[0].mxu0
        %v1048 = vadd.f32 0.0, %v1047
        %v1049 = vpop.f32.mrb[0].mxu0
        %v1050 = vpop.f32.mrb[0].mxu0
        %v1051 = vadd.f32 0.0, %v1050
        %v1052 = vpop.f32.mrb[0].mxu0
        %1053 = vdwg.mxu0
        %v1054 = vadd.f32 %v951, %v1024
        %v1055 = vadd.f32 %v952, %v1027
        %v1056 = vadd.f32 %v953, %v1032
        %v1057 = vadd.f32 %v954, %v1035
        %v1058 = vadd.f32 %v955, %v1040
        %v1059 = vadd.f32 %v956, %v1043
        %v1060 = vadd.f32 %v957, %v1048
        %v1061 = vadd.f32 %v958, %v1051
        %v1062 = vld [vmem:[%s856 + $0x1] sm:$0xff]
        %v1063 = vld [vmem:[%s856 + $0x11] sm:$0xff]
        %v1064 = vld [vmem:[%s856 + $0x21] sm:$0xff]
        %v1065 = vld [vmem:[%s856 + $0x31] sm:$0xff]
        %v1066 = vld [vmem:[%s856 + $0x41] sm:$0xff]
        %v1067 = vld [vmem:[%s856 + $0x51] sm:$0xff]
        %v1068 = vld [vmem:[%s856 + $0x61] sm:$0xff]
        %v1069 = vld [vmem:[%s856 + $0x71] sm:$0xff]
        %v1070 = vpack.c.bf16 %v1063, %v1062
        %v1071 = vpack.c.bf16 %v1065, %v1064
        %v1072 = vpack.c.bf16 %v1067, %v1066
        %v1073 = vpack.c.bf16 %v1069, %v1068
        %s1074 = scalar_lea.vmem %s248, 16
        %v1075 = vld [vmem:[%s1074] sm:$0x3]
        %v1077 = vsel %vm284, %v1070, 0
        %v1080 = vsel %vm284, %v1071, 0
        %v1083 = vsel %vm284, %v1072, 0
        %v1086 = vsel %vm284, %v1073, 0
        %v1089 = vsel %vm297, %v1075, 0
        %1091 = vmatprep.subr.bf16.mxu0 0
        %1092 = vmatpush1.bf16.msra.mxu0 %v1089
        %1093 = vmatprep.subr.bf16.mxu0 0
        %1094 = vmatpush1.bf16.msra.mxu0 0
        %1095 = vmatprep.subr.bf16.mxu0 0
        %1096 = vmatpush1.bf16.msra.mxu0 0
        %1097 = vmatprep.subr.bf16.mxu0 0
        %1098 = vmatpush1.bf16.msra.mxu0 0
        %1099 = vmatprep.subr.bf16.mxu0 0
        %1100 = vmatpush1.bf16.msra.mxu0 0
        %1101 = vmatprep.subr.bf16.mxu0 0
        %1102 = vmatpush1.bf16.msra.mxu0 0
        %1103 = vmatprep.subr.bf16.mxu0 0
        %1104 = vmatpush1.bf16.msra.mxu0 0
        %1105 = vmatprep.subr.bf16.mxu0 0
        %1106 = vmatpush1.bf16.msra.mxu0 0
        %1107 = vmatprep.subr.bf16.mxu0 0
        %1108 = vmatpush1.bf16.msra.mxu0 0
        %1109 = vmatprep.subr.bf16.mxu0 0
        %1110 = vmatpush1.bf16.msra.mxu0 0
        %1111 = vmatprep.subr.bf16.mxu0 0
        %1112 = vmatpush1.bf16.msra.mxu0 0
        %1113 = vmatprep.subr.bf16.mxu0 0
        %1114 = vmatpush1.bf16.msra.mxu0 0
        %1115 = vmatprep.subr.bf16.mxu0 0
        %1116 = vmatpush1.bf16.msra.mxu0 0
        %1117 = vmatprep.subr.bf16.mxu0 0
        %1118 = vmatpush1.bf16.msra.mxu0 0
        %1119 = vmatprep.subr.bf16.mxu0 0
        %1120 = vmatpush1.bf16.msra.mxu0 0
        %1121 = vmatprep.subr.bf16.mxu0 0
        %1122 = vmatpush1.bf16.msra.mxu0 0
        %1123 = vmatprep.mubr.bf16.mxu0 0
        %1124 = vmatmul.mubr.bf16.gmra.mrb[0].mxu0 %v1077
        %v1125 = vpop.f32.mrb[0].mxu0
        %v1126 = vadd.f32 0.0, %v1125
        %v1127 = vpop.f32.mrb[0].mxu0
        %v1128 = vpop.f32.mrb[0].mxu0
        %v1129 = vadd.f32 0.0, %v1128
        %v1130 = vpop.f32.mrb[0].mxu0
        %1131 = vmatprep.mubr.bf16.mxu0 0
        %1132 = vmatmul.mubr.bf16.gmra.mrb[0].mxu0 %v1080
        %v1133 = vpop.f32.mrb[0].mxu0
        %v1134 = vadd.f32 0.0, %v1133
        %v1135 = vpop.f32.mrb[0].mxu0
        %v1136 = vpop.f32.mrb[0].mxu0
        %v1137 = vadd.f32 0.0, %v1136
        %v1138 = vpop.f32.mrb[0].mxu0
        %1139 = vmatprep.mubr.bf16.mxu0 0
        %1140 = vmatmul.mubr.bf16.gmra.mrb[0].mxu0 %v1083
        %v1141 = vpop.f32.mrb[0].mxu0
        %v1142 = vadd.f32 0.0, %v1141
        %v1143 = vpop.f32.mrb[0].mxu0
        %v1144 = vpop.f32.mrb[0].mxu0
        %v1145 = vadd.f32 0.0, %v1144
        %v1146 = vpop.f32.mrb[0].mxu0
        %1147 = vmatprep.mubr.bf16.mxu0 0
        %1148 = vmatmul.mubr.bf16.gmra.mrb[0].mxu0 %v1086
        %v1149 = vpop.f32.mrb[0].mxu0
        %v1150 = vadd.f32 0.0, %v1149
        %v1151 = vpop.f32.mrb[0].mxu0
        %v1152 = vpop.f32.mrb[0].mxu0
        %v1153 = vadd.f32 0.0, %v1152
        %v1154 = vpop.f32.mrb[0].mxu0
        %1155 = vdwg.mxu0
        %v1156 = vadd.f32 %v1054, %v1126
        %v1157 = vadd.f32 %v1055, %v1129
        %v1158 = vadd.f32 %v1056, %v1134
        %v1159 = vadd.f32 %v1057, %v1137
        %v1160 = vadd.f32 %v1058, %v1142
        %v1161 = vadd.f32 %v1059, %v1145
        %v1162 = vadd.f32 %v1060, %v1150
        %v1163 = vadd.f32 %v1061, %v1153
        %v1164 = vld [vmem:[%s251] sm:$0x1]
        %v1166 = vlaneseq
        %v1167 = vshrl.u32 %v1166, 7
        %v1168 = vsub.s32 0, %v1167
        %v1169 = vrot.slane %v1164, %v1168
        %v1171 = vmul.f32 %v1156, %v1169
        %v1172 = vmul.f32 %v1157, %v1169
        %v1173 = vmul.f32 %v1158, %v1169
        %v1174 = vmul.f32 %v1159, %v1169
        %v1175 = vmul.f32 %v1160, %v1169
        %v1176 = vmul.f32 %v1161, %v1169
        %v1177 = vmul.f32 %v1162, %v1169
        %v1178 = vmul.f32 %v1163, %v1169
        %v1179 = vld [vmem:[%s254] sm:$0x1]
        %v1181 = vlaneseq
        %v1182 = vshrl.u32 %v1181, 7
        %v1183 = vsub.s32 0, %v1182
        %v1184 = vrot.slane %v1179, %v1183
        %v1186 = vadd.f32 %v1171, %v1184
        %v1187 = vadd.f32 %v1172, %v1184
        %v1188 = vadd.f32 %v1173, %v1184
        %v1189 = vadd.f32 %v1174, %v1184
        %v1190 = vadd.f32 %v1175, %v1184
        %v1191 = vadd.f32 %v1176, %v1184
        %v1192 = vadd.f32 %v1177, %v1184
        %v1193 = vadd.f32 %v1178, %v1184
        %v1194 = vmul.f32 %v1186, %v1186
        %v1195 = vmul.f32 %v1187, %v1187
        %v1196 = vmul.f32 %v1188, %v1188
        %v1197 = vmul.f32 %v1189, %v1189
        %v1198 = vmul.f32 %v1190, %v1190
        %v1199 = vmul.f32 %v1191, %v1191
        %v1200 = vmul.f32 %v1192, %v1192
        %v1201 = vmul.f32 %v1193, %v1193
        %v1202 = vmul.f32 %v1186, 0.5
        %v1203 = vmul.f32 %v1187, 0.5
        %v1204 = vmul.f32 %v1188, 0.5
        %v1205 = vmul.f32 %v1189, 0.5
        %v1206 = vmul.f32 %v1190, 0.5
        %v1207 = vmul.f32 %v1191, 0.5
        %v1208 = vmul.f32 %v1192, 0.5
        %v1209 = vmul.f32 %v1193, 0.5
        %v1210 = vmul.f32 %v1194, 0.044715
        %v1211 = vmul.f32 %v1195, 0.044715
        %v1212 = vmul.f32 %v1196, 0.044715
        %v1213 = vmul.f32 %v1197, 0.044715
        %v1214 = vmul.f32 %v1198, 0.044715
        %v1215 = vmul.f32 %v1199, 0.044715
        %v1216 = vmul.f32 %v1200, 0.044715
        %v1217 = vmul.f32 %v1201, 0.044715
        %v1218 = vmul.f32 %v1210, %v1186
        %v1219 = vmul.f32 %v1211, %v1187
        %v1220 = vmul.f32 %v1212, %v1188
        %v1221 = vmul.f32 %v1213, %v1189
        %v1222 = vmul.f32 %v1214, %v1190
        %v1223 = vmul.f32 %v1215, %v1191
        %v1224 = vmul.f32 %v1216, %v1192
        %v1225 = vmul.f32 %v1217, %v1193
        %v1226 = vadd.f32 %v1186, %v1218
        %v1227 = vadd.f32 %v1187, %v1219
        %v1228 = vadd.f32 %v1188, %v1220
        %v1229 = vadd.f32 %v1189, %v1221
        %v1230 = vadd.f32 %v1190, %v1222
        %v1231 = vadd.f32 %v1191, %v1223
        %v1232 = vadd.f32 %v1192, %v1224
        %v1233 = vadd.f32 %v1193, %v1225
        %v1234 = vmul.f32 %v1226, 0.7978846
        %v1235 = vmul.f32 %v1227, 0.7978846
        %v1236 = vmul.f32 %v1228, 0.7978846
        %v1237 = vmul.f32 %v1229, 0.7978846
        %v1238 = vmul.f32 %v1230, 0.7978846
        %v1239 = vmul.f32 %v1231, 0.7978846
        %v1240 = vmul.f32 %v1232, 0.7978846
        %v1241 = vmul.f32 %v1233, 0.7978846
        %v1242 = vtanh.pop %v1234
        %v1243 = vtanh.pop %v1235
        %v1244 = vtanh.pop %v1236
        %v1245 = vtanh.pop %v1237
        %v1246 = vtanh.pop %v1238
        %v1247 = vtanh.pop %v1239
        %v1248 = vtanh.pop %v1240
        %v1249 = vtanh.pop %v1241
        %v1250 = vadd.f32 %v1242, 1.0
        %v1251 = vadd.f32 %v1243, 1.0
        %v1252 = vadd.f32 %v1244, 1.0
        %v1253 = vadd.f32 %v1245, 1.0
        %v1254 = vadd.f32 %v1246, 1.0
        %v1255 = vadd.f32 %v1247, 1.0
        %v1256 = vadd.f32 %v1248, 1.0
        %v1257 = vadd.f32 %v1249, 1.0
        %v1258 = vmul.f32 %v1202, %v1250
        %v1259 = vmul.f32 %v1203, %v1251
        %v1260 = vmul.f32 %v1204, %v1252
        %v1261 = vmul.f32 %v1205, %v1253
        %v1262 = vmul.f32 %v1206, %v1254
        %v1263 = vmul.f32 %v1207, %v1255
        %v1264 = vmul.f32 %v1208, %v1256
        %v1265 = vmul.f32 %v1209, %v1257
        %1266 = vst [vmem:[%s239] sm:$0xff] %v1258
        %1267 = vst [vmem:[%s239 + $0x8] sm:$0xff] %v1259
        %1268 = vst [vmem:[%s239 + $0x10] sm:$0xff] %v1260
        %1269 = vst [vmem:[%s239 + $0x18] sm:$0xff] %v1261
        %1270 = vst [vmem:[%s239 + $0x20] sm:$0xff] %v1262
        %1271 = vst [vmem:[%s239 + $0x28] sm:$0xff] %v1263
        %1272 = vst [vmem:[%s239 + $0x30] sm:$0xff] %v1264
        %1273 = vst [vmem:[%s239 + $0x38] sm:$0xff] %v1265
        %s1274 = sand.u32 %s144, 1
        %s1275 = scalar_lea.sflag [#allocation3], %s1274
        %s1276 = sand.u32 %s144, 1
        %s1277 = smul.addr %s1276, 64
        %s1278 = scalar_lea.vmem [#allocation2], %s1277
        // Predicated region
        $region37: #{tpu_custom_call.1} parent=35 // pred_check
          %p1279 = pneg %p154
        $region38: #{tpu_custom_call.1} parent=35 // pred_check_branch
          %1281 = sbr.rel (%p1279) target = $region40
        $region39: #{tpu_custom_call.1} parent=35 // pred_region
          %s1283 = ssub.s32 1024, 1024
          %1284 = vsyncadd %s1275, %s1283
          %s1285 = smul.addr %s22, 8
          %s1286 = sadd.s32 %s23, %s1285
          %s1287 = smul.addr %s1286, 128
          %s1288 = scalar_lea.hbm %s4, %s1287
          %s1289 = sshll.u32 %s1278, 4
          %s1290 = int_to_ptr.vmem [resolvable:$true] %s1289
          %1295 = dma.vmem_to_hbm [thread:$0]  %s1290, 1024, %s1288, %s1275, 128, 128, 8
        $region40: #{tpu_custom_call.1} parent=35 // pred_fallthru
          _
      $region36: #{tpu_custom_call.1} parent=5 // pred_fallthru
        _
      %p1296 = scmp.le.s32.totalorder 2, %s13
      // Predicated region
      $region41: #{tpu_custom_call.1} parent=5 // pred_check
        %p1297 = pneg %p1296
      $region42: #{tpu_custom_call.1} parent=5 // pred_check_branch
        %1299 = sbr.rel (%p1297) target = $region44
      $region43: #{tpu_custom_call.1} parent=5 // pred_region
        %s1300 = ssub.s32 %s13, 2
        // Predicated region
        $region45: #{tpu_custom_call.1} parent=43 // pred_check
          %p1301 = pneg %p160
        $region46: #{tpu_custom_call.1} parent=43 // pred_check_branch
          %1303 = sbr.rel (%p1301) target = $region48
        $region47: #{tpu_custom_call.1} parent=43 // pred_region
          %s1304 = sand.u32 %s145, 1
          %s1305 = scalar_lea.sflag [#allocation3], %s1304
          %s1306 = sand.u32 %s145, 1
          %s1307 = smul.addr %s1306, 64
          %s1308 = scalar_lea.vmem [#allocation2], %s1307
          %1309 = dma.done %s1305, 1024
        $region48: #{tpu_custom_call.1} parent=43 // pred_fallthru
          _
      $region44: #{tpu_custom_call.1} parent=5 // pred_fallthru
        _
    $region6: #{tpu_custom_call.1} parent=1 // loop_footer
      %s17 = sadd.s32 1, %s13
    $region7: #{tpu_custom_call.1} parent=1 // loop_footer_branch
      %12 = sbr.rel target = $region3
    $region8: #{tpu_custom_call.1} parent=1 // loop_exit
      _
    %1310 = vsyncpa [#allocation3], 1
    %s1311 = scalar_lea.sflag [#allocation3], 1
    %1312 = vsyncpa %s1311, 1

</llo_original>
